<compile_context>
chip_gen: v5e
topology: v5e:2x2
jax: 0.10.0
libtpu: 0.0.40
codegen_flags: <defaults>
</compile_context>

<pallas_src>
import functools
import math

import jax
import jax.numpy as jnp
from jax.experimental import pallas as pl
from jax.experimental.pallas import tpu as pltpu


# --------------------------------------------------------------------------- utils
def _round_up(x, m):
    return ((x + m - 1) // m) * m


# --------------------------------------------------------------------------- fused QKV projection
def _qkv_kernel(x_ref, w_ref, b_ref, o_ref):
    y = jnp.dot(x_ref[...], w_ref[...], preferred_element_type=jnp.float32)
    o_ref[...] = (y + b_ref[...]).astype(o_ref.dtype)


def qkv_proj(x, w, b, *, tile_n=256):
    n, d_in = x.shape
    d_out = w.shape[1]
    tn = min(tile_n, _round_up(n, 8))
    return pl.pallas_call(
        _qkv_kernel,
        out_shape=jax.ShapeDtypeStruct((n, d_out), x.dtype),
        grid_spec=pltpu.PrefetchScalarGridSpec(
            num_scalar_prefetch=0,
            grid=(pl.cdiv(n, tn),),
            in_specs=[
                pl.BlockSpec((tn, d_in), lambda i: (i, 0)),      # activations, row-tiled
                pl.BlockSpec((d_in, d_out), lambda i: (0, 0)),   # Wqkv resident in VMEM
                pl.BlockSpec((1, d_out), lambda i: (0, 0)),      # bias resident
            ],
            out_specs=pl.BlockSpec((tn, d_out), lambda i: (i, 0)),
        ),
        compiler_params=pltpu.CompilerParams(dimension_semantics=("parallel",)),
    )(x, w, b)


# --------------------------------------------------------------------------- masked attention (all heads per grid step)
def _attn_kernel(qkv_ref, m_ref, o_ref, *, n_heads, d_model, scale):
    dk = d_model // n_heads
    qkv = qkv_ref[...].astype(jnp.float32)        # (S, 3D) loaded once for all heads
    mask = m_ref[...]                             # (1, S); 1.0 where key is PAD
    outs = []
    for h in range(n_heads):                      # static unrolled head loop
        q = qkv[:, h * dk:(h + 1) * dk]
        k = qkv[:, d_model + h * dk:d_model + (h + 1) * dk]
        v = qkv[:, 2 * d_model + h * dk:2 * d_model + (h + 1) * dk]
        # q @ k^T via dot_general (contract last dims) -> no explicit transpose relayout.
        sc = jax.lax.dot_general(q, k, (((1,), (1,)), ((), ())),
                                 preferred_element_type=jnp.float32) * scale
        sc = jnp.where(mask > 0.5, jnp.float32(-1e9), sc)   # masked_fill_(mask, -1e9)
        mx = jnp.max(sc, axis=-1, keepdims=True)
        p = jnp.exp(sc - mx)
        l = jnp.sum(p, axis=-1, keepdims=True)
        w = p * pl.reciprocal(l)                  # reciprocal + broadcast multiply
        outs.append(jnp.dot(w, v, preferred_element_type=jnp.float32))
    # concat-head layout (S, D) written in one lane-dense store; already the layout Wo needs.
    o_ref[...] = jnp.concatenate(outs, axis=-1).astype(o_ref.dtype)


def mha_attention(qkv, key_pad_mask, *, n_heads, d_model):
    b, s, _ = qkv.shape
    scale = 1.0 / math.sqrt(d_model // n_heads)
    mask3 = key_pad_mask.astype(jnp.float32).reshape(b, 1, s)
    return pl.pallas_call(
        functools.partial(_attn_kernel, n_heads=n_heads, d_model=d_model, scale=scale),
        out_shape=jax.ShapeDtypeStruct((b, s, d_model), qkv.dtype),
        grid_spec=pltpu.PrefetchScalarGridSpec(
            num_scalar_prefetch=0,
            grid=(b,),
            in_specs=[
                pl.BlockSpec((None, s, 3 * d_model), lambda i: (i, 0, 0)),  # squeezed batch dim
                pl.BlockSpec((None, 1, s), lambda i: (i, 0, 0)),
            ],
            out_specs=pl.BlockSpec((None, s, d_model), lambda i: (i, 0, 0)),
        ),
        compiler_params=pltpu.CompilerParams(dimension_semantics=("parallel",)),
    )(qkv, mask3)


# --------------------------------------------------------------------------- Wo projection + residual + LayerNorm (fused)
def _proj_add_ln_kernel(a_ref, w_ref, b_ref, r_ref, g_ref, be_ref, o_ref, *, eps):
    y = jnp.dot(a_ref[...], w_ref[...], preferred_element_type=jnp.float32) + b_ref[...]
    y = y + r_ref[...].astype(jnp.float32)        # residual add (dropout = identity in eval)
    mean = jnp.mean(y, axis=-1, keepdims=True)
    yc = y - mean
    var = jnp.mean(yc * yc, axis=-1, keepdims=True)
    inv = jax.lax.rsqrt(var + eps)
    o_ref[...] = (yc * inv * g_ref[...] + be_ref[...]).astype(o_ref.dtype)


def proj_add_ln(a, w, b, res, gamma, beta, *, eps=1e-6, tile_n=256):
    n, d_in = a.shape
    d_out = w.shape[1]
    tn = min(tile_n, _round_up(n, 8))
    return pl.pallas_call(
        functools.partial(_proj_add_ln_kernel, eps=eps),
        out_shape=jax.ShapeDtypeStruct((n, d_out), a.dtype),
        grid_spec=pltpu.PrefetchScalarGridSpec(
            num_scalar_prefetch=0,
            grid=(pl.cdiv(n, tn),),
            in_specs=[
                pl.BlockSpec((tn, d_in), lambda i: (i, 0)),
                pl.BlockSpec((d_in, d_out), lambda i: (0, 0)),
                pl.BlockSpec((1, d_out), lambda i: (0, 0)),
                pl.BlockSpec((tn, d_out), lambda i: (i, 0)),     # residual tile
                pl.BlockSpec((1, d_out), lambda i: (0, 0)),
                pl.BlockSpec((1, d_out), lambda i: (0, 0)),
            ],
            out_specs=pl.BlockSpec((tn, d_out), lambda i: (i, 0)),
        ),
        compiler_params=pltpu.CompilerParams(dimension_semantics=("parallel",)),
    )(a, w, b, res, gamma, beta)


# --------------------------------------------------------------------------- FFN (w1+ReLU -> w2) + residual + LayerNorm (fused)
def _ffn_add_ln_kernel(h_ref, w1_ref, b1_ref, w2_ref, b2_ref, g_ref, be_ref, o_ref, *, eps):
    h = h_ref[...].astype(jnp.float32)
    f = jnp.dot(h, w1_ref[...], preferred_element_type=jnp.float32) + b1_ref[...]
    f = jnp.maximum(f, 0.0)                       # ReLU fused; (tn, d_ff) never leaves VMEM
    f = jnp.dot(f, w2_ref[...], preferred_element_type=jnp.float32) + b2_ref[...]
    y = h + f                                     # residual add (dropout = identity in eval)
    mean = jnp.mean(y, axis=-1, keepdims=True)
    yc = y - mean
    var = jnp.mean(yc * yc, axis=-1, keepdims=True)
    inv = jax.lax.rsqrt(var + eps)
    o_ref[...] = (yc * inv * g_ref[...] + be_ref[...]).astype(o_ref.dtype)


def ffn_add_ln(h, w1, b1, w2, b2, gamma, beta, *, eps=1e-6, tile_n=256):
    n, d = h.shape
    d_ff = w1.shape[1]
    tn = min(tile_n, _round_up(n, 8))
    return pl.pallas_call(
        functools.partial(_ffn_add_ln_kernel, eps=eps),
        out_shape=jax.ShapeDtypeStruct((n, d), h.dtype),
        grid_spec=pltpu.PrefetchScalarGridSpec(
            num_scalar_prefetch=0,
            grid=(pl.cdiv(n, tn),),
            in_specs=[
                pl.BlockSpec((tn, d), lambda i: (i, 0)),
                pl.BlockSpec((d, d_ff), lambda i: (0, 0)),       # w1 resident
                pl.BlockSpec((1, d_ff), lambda i: (0, 0)),
                pl.BlockSpec((d_ff, d), lambda i: (0, 0)),       # w2 resident
                pl.BlockSpec((1, d), lambda i: (0, 0)),
                pl.BlockSpec((1, d), lambda i: (0, 0)),
                pl.BlockSpec((1, d), lambda i: (0, 0)),
            ],
            out_specs=pl.BlockSpec((tn, d), lambda i: (i, 0)),
        ),
        compiler_params=pltpu.CompilerParams(dimension_semantics=("parallel",)),
    )(h, w1, b1, w2, b2, gamma, beta)


# --------------------------------------------------------------------------- encoder layer / model
def encoder_layer(x, key_pad_mask, p, *, n_heads):
    b, s, d = x.shape
    x2 = x.reshape(b * s, d)                                        # free reshape (no relayout)

    qkv = qkv_proj(x2, p["wqkv"], p["bqkv"])                        # (B*S, 3D), one MXU matmul
    attn = mha_attention(qkv.reshape(b, s, 3 * d), key_pad_mask,
                         n_heads=n_heads, d_model=d)                # (B, S, D), concat-head layout
    # fused: LN1(x + attn @ Wo + bo)
    h1 = proj_add_ln(attn.reshape(b * s, d), p["wo"], p["bo"], x2, p["ln1_g"], p["ln1_b"])
    # fused: LN2(h1 + relu(h1 @ W1 + b1) @ W2 + b2)
    h2 = ffn_add_ln(h1, p["w1"], p["b1"], p["w2"], p["b2"], p["ln2_g"], p["ln2_b"])
    return h2.reshape(b, s, d)


@functools.partial(jax.jit, static_argnames=("n_heads", "pad_id"))
def transformer_encoder(params, inputs, *, n_heads, pad_id=0):
    b, s = inputs.shape
    positions = jnp.broadcast_to(jnp.arange(1, s + 1, dtype=jnp.int32), (b, s))
    positions = jnp.where(inputs == pad_id, 0, positions)
    # token + positional embedding gathers are data-dependent row gathers -> JAX glue.
    x = jnp.take(params["embedding"], inputs, axis=0) + \
        jnp.take(params["pos_table"], positions, axis=0)
    key_pad_mask = (inputs == pad_id)
    for layer in params["layers"]:
        x = encoder_layer(x, key_pad_mask, layer, n_heads=n_heads)
    return x


# --------------------------------------------------------------------------- params / tables
def get_sinusoid_table(n_rows, d_model):
    pos = jnp.arange(n_rows, dtype=jnp.float32)[:, None]
    i = jnp.arange(d_model)[None, :]
    angle = pos / jnp.power(10000.0, (2 * (i // 2)).astype(jnp.float32) / d_model)
    return jnp.where(i % 2 == 0, jnp.sin(angle), jnp.cos(angle)).astype(jnp.float32)


def init_params(key, vocab_size, max_len, d_model, n_layers, n_heads, d_ff):
    keys = jax.random.split(key, 1 + n_layers)
    emb = jax.random.normal(keys[0], (vocab_size, d_model), jnp.float32) * 0.02

    def lin(k, din, dout):
        bound = 1.0 / math.sqrt(din)
        kw, kb = jax.random.split(k)
        w = jax.random.uniform(kw, (din, dout), jnp.float32, -bound, bound)
        bb = jax.random.uniform(kb, (1, dout), jnp.float32, -bound, bound)
        return w, bb

    layers = []
    for li in range(n_layers):
        ks = jax.random.split(keys[1 + li], 6)
        wq, bq = lin(ks[0], d_model, d_model)
        wk, bk = lin(ks[1], d_model, d_model)
        wv, bv = lin(ks[2], d_model, d_model)
        wo, bo = lin(ks[3], d_model, d_model)
        w1, b1 = lin(ks[4], d_model, d_ff)
        w2, b2 = lin(ks[5], d_ff, d_model)
        layers.append(dict(
            wqkv=jnp.concatenate([wq, wk, wv], axis=1),
            bqkv=jnp.concatenate([bq, bk, bv], axis=1),
            wo=wo, bo=bo, w1=w1, b1=b1, w2=w2, b2=b2,
            ln1_g=jnp.ones((1, d_model), jnp.float32),
            ln1_b=jnp.zeros((1, d_model), jnp.float32),
            ln2_g=jnp.ones((1, d_model), jnp.float32),
            ln2_b=jnp.zeros((1, d_model), jnp.float32),
        ))
    return dict(embedding=emb, pos_table=get_sinusoid_table(max_len + 1, d_model),
                layers=layers)


# --------------------------------------------------------------------------- pure-JAX reference
def _ln_ref(y, g, beta, eps=1e-6):
    mean = jnp.mean(y, axis=-1, keepdims=True)
    var = jnp.mean((y - mean) ** 2, axis=-1, keepdims=True)
    return (y - mean) / jnp.sqrt(var + eps) * g + beta


def reference(params, inputs, *, n_heads, pad_id=0):
    b, s = inputs.shape
    d = params["embedding"].shape[1]
    dk = d // n_heads
    positions = jnp.broadcast_to(jnp.arange(1, s + 1, dtype=jnp.int32), (b, s))
    positions = jnp.where(inputs == pad_id, 0, positions)
    x = params["embedding"][inputs] + params["pos_table"][positions]
    attn_mask = (inputs == pad_id)[:, None, None, :]           # (B,1,1,S) key padding
    for p in params["layers"]:
        x2 = x.reshape(b * s, d)
        qkv = x2 @ p["wqkv"] + p["bqkv"]
        q, k, v = jnp.split(qkv, 3, axis=-1)
        heads = lambda t: t.reshape(b, s, n_heads, dk).transpose(0, 2, 1, 3)
        qh, kh, vh = heads(q), heads(k), heads(v)
        scores = jnp.einsum("bhqd,bhkd->bhqk", qh, kh) / math.sqrt(dk)
        scores = jnp.where(attn_mask, -1e9, scores)
        w = jax.nn.softmax(scores, axis=-1)
        attn = jnp.einsum("bhqk,bhkd->bhqd", w, vh)
        attn = attn.transpose(0, 2, 1, 3).reshape(b * s, d)
        attn = attn @ p["wo"] + p["bo"]
        h1 = _ln_ref(x2 + attn, p["ln1_g"], p["ln1_b"])
        ffn = jnp.maximum(h1 @ p["w1"] + p["b1"], 0.0) @ p["w2"] + p["b2"]
        h2 = _ln_ref(h1 + ffn, p["ln2_g"], p["ln2_b"])
        x = h2.reshape(b, s, d)
    return x


if __name__ == "__main__":
    B, S, D, H, FF, L, V = 2, 16, 64, 4, 128, 2, 32
    key = jax.random.PRNGKey(0)
    k_p, k_in = jax.random.split(key)

    params = init_params(k_p, V, max_len=S, d_model=D, n_layers=L, n_heads=H, d_ff=FF)
    inputs = jax.random.randint(k_in, (B, S), 1, V).astype(jnp.int32)
    inputs = inputs.at[0, 12:].set(0).at[1, 10:].set(0)        # pad_id = 0 tail padding

    out = transformer_encoder(params, inputs, n_heads=H, pad_id=0)
    out = jax.block_until_ready(out)

    ref = reference(params, inputs, n_heads=H, pad_id=0)
    assert out.shape == (B, S, D), out.shape
    assert jnp.allclose(out, ref, atol=1e-4, rtol=1e-4), \
        float(jnp.max(jnp.abs(out - ref)))
    print("KERNEL_OK")
</pallas_src>

<mosaic_0001>
module attributes {stable_mosaic.version = 11 : i64} {
  func.func @_qkv_kernel(%arg0: i32, %arg1: memref<32x64xf32, #tpu.memory_space<vmem>>, %arg2: memref<64x192xf32, #tpu.memory_space<vmem>>, %arg3: memref<1x192xf32, #tpu.memory_space<vmem>>, %arg4: memref<32x192xf32, #tpu.memory_space<vmem>>) attributes {dimension_semantics = [#tpu.dimension_semantics<parallel>], iteration_bounds = array<i64: 1>, scalar_prefetch = 0 : i64, scratch_operands = 0 : i64, tpu.core_type = #tpu.core_type<tc>, window_params = [{transform_indices = @transform_0, window_bounds = array<i64: 32, 64>}, {pipeline_mode = #tpu.pipeline_mode<synchronous>, transform_indices = @transform_1, window_bounds = array<i64: 64, 192>}, {pipeline_mode = #tpu.pipeline_mode<synchronous>, transform_indices = @transform_2, window_bounds = array<i64: 1, 192>}, {transform_indices = @transform_3, window_bounds = array<i64: 32, 192>}]} {
    %c0 = arith.constant 0 : index
    %c0_0 = arith.constant 0 : index
    %0 = vector.load %arg1[%c0, %c0_0] : memref<32x64xf32, #tpu.memory_space<vmem>>, vector<32x64xf32>
    %c0_1 = arith.constant 0 : index
    %c0_2 = arith.constant 0 : index
    %1 = vector.load %arg2[%c0_1, %c0_2] : memref<64x192xf32, #tpu.memory_space<vmem>>, vector<64x192xf32>
    %cst = arith.constant dense<0.000000e+00> : vector<32x192xf32>
    %2 = tpu.matmul %0, %1, %cst {dimension_numbers = #tpu.dot_dimension_numbers<[1], [0], [0], [1], [0, 0, 1, 1], [], []>} : vector<32x64xf32>, vector<64x192xf32>, vector<32x192xf32> -> vector<32x192xf32>
    %c0_3 = arith.constant 0 : index
    %c0_4 = arith.constant 0 : index
    %3 = vector.load %arg3[%c0_3, %c0_4] : memref<1x192xf32, #tpu.memory_space<vmem>>, vector<1x192xf32>
    %4 = vector.broadcast %3 : vector<1x192xf32> to vector<32x192xf32>
    %5 = arith.addf %2, %4 : vector<32x192xf32>
    %c0_5 = arith.constant 0 : index
    %c0_6 = arith.constant 0 : index
    %6 = vector.load %arg4[%c0_5, %c0_6] : memref<32x192xf32, #tpu.memory_space<vmem>>, vector<32x192xf32>
    tpu.vector_store %arg4[%c0_5, %c0_6], %5 {strides = array<i32>} : memref<32x192xf32, #tpu.memory_space<vmem>>, vector<32x192xf32>,
    return
  }
  func.func @transform_0(%arg0: i32) -> (i32, i32) {
    %c0_i32 = arith.constant 0 : i32
    %c0_i32_0 = arith.constant 0 : i32
    return %arg0, %c0_i32 : i32, i32
  }
  func.func @transform_1(%arg0: i32) -> (i32, i32) {
    %c0_i32 = arith.constant 0 : i32
    %c0_i32_0 = arith.constant 0 : i32
    %c0_i32_1 = arith.constant 0 : i32
    return %c0_i32, %c0_i32_0 : i32, i32
  }
  func.func @transform_2(%arg0: i32) -> (i32, i32) {
    %c0_i32 = arith.constant 0 : i32
    %c0_i32_0 = arith.constant 0 : i32
    %c0_i32_1 = arith.constant 0 : i32
    return %c0_i32, %c0_i32_0 : i32, i32
  }
  func.func @transform_3(%arg0: i32) -> (i32, i32) {
    %c0_i32 = arith.constant 0 : i32
    %c0_i32_0 = arith.constant 0 : i32
    return %arg0, %c0_i32 : i32, i32
  }
}

module attributes {stable_mosaic.version = 11 : i64} {
  func.func @_attn_kernel(%arg0: i32, %arg1: memref<1x16x192xf32, #tpu.memory_space<vmem>>, %arg2: memref<1x1x16xf32, #tpu.memory_space<vmem>>, %arg3: memref<1x16x64xf32, #tpu.memory_space<vmem>>) attributes {dimension_semantics = [#tpu.dimension_semantics<parallel>], iteration_bounds = array<i64: 2>, scalar_prefetch = 0 : i64, scratch_operands = 0 : i64, tpu.core_type = #tpu.core_type<tc>, window_params = [{transform_indices = @transform_0, window_bounds = array<i64: 1, 16, 192>}, {transform_indices = @transform_1, window_bounds = array<i64: 1, 1, 16>}, {transform_indices = @transform_2, window_bounds = array<i64: 1, 16, 64>}]} {
    %c0 = arith.constant 0 : index
    %c0_0 = arith.constant 0 : index
    %c0_1 = arith.constant 0 : index
    %0 = vector.load %arg1[%c0, %c0_0, %c0_1] : memref<1x16x192xf32, #tpu.memory_space<vmem>>, vector<1x16x192xf32>
    %1 = vector.shape_cast %0 : vector<1x16x192xf32> to vector<16x192xf32>
    %c0_2 = arith.constant 0 : index
    %c0_3 = arith.constant 0 : index
    %c0_4 = arith.constant 0 : index
    %2 = vector.load %arg2[%c0_2, %c0_3, %c0_4] : memref<1x1x16xf32, #tpu.memory_space<vmem>>, vector<1x1x16xf32>
    %3 = vector.shape_cast %2 : vector<1x1x16xf32> to vector<1x16xf32>
    %4 = vector.extract_strided_slice %1 {offsets = [0, 0], sizes = [16, 16], strides = [1, 1]} : vector<16x192xf32> to vector<16x16xf32>
    %5 = vector.extract_strided_slice %1 {offsets = [0, 64], sizes = [16, 16], strides = [1, 1]} : vector<16x192xf32> to vector<16x16xf32>
    %6 = vector.extract_strided_slice %1 {offsets = [0, 128], sizes = [16, 16], strides = [1, 1]} : vector<16x192xf32> to vector<16x16xf32>
    %cst = arith.constant dense<0.000000e+00> : vector<16x16xf32>
    %7 = tpu.matmul %4, %5, %cst {dimension_numbers = #tpu.dot_dimension_numbers<[1], [1], [0], [0], [0, 0, 1, 0], [], []>} : vector<16x16xf32>, vector<16x16xf32>, vector<16x16xf32> -> vector<16x16xf32>
    %cst_5 = arith.constant 2.500000e-01 : f32
    %8 = vector.broadcast %cst_5 : f32 to vector<16x16xf32>
    %9 = arith.mulf %7, %8 : vector<16x16xf32>
    %cst_6 = arith.constant 5.000000e-01 : f32
    %10 = vector.broadcast %cst_6 : f32 to vector<1x16xf32>
    %11 = arith.cmpf ogt, %3, %10 : vector<1x16xf32>
    %cst_7 = arith.constant -1.000000e+09 : f32
    %12 = vector.shape_cast %11 : vector<1x16xi1> to vector<1x16xi1>
    %13 = vector.broadcast %12 : vector<1x16xi1> to vector<16x16xi1>
    %14 = vector.broadcast %cst_7 : f32 to vector<16x16xf32>
    %15 = arith.select %13, %14, %9 : vector<16x16xi1>, vector<16x16xf32>
    %cst_8 = arith.constant dense<0xFF800000> : vector<16xf32>
    %16 = vector.multi_reduction <maximumf>, %15, %cst_8 [1] : vector<16x16xf32> to vector<16xf32>
    %17 = vector.shape_cast %16 : vector<16xf32> to vector<16x1xf32>
    %18 = vector.broadcast %17 : vector<16x1xf32> to vector<16x16xf32>
    %19 = arith.subf %15, %18 : vector<16x16xf32>
    %20 = math.exp %19 : vector<16x16xf32>
    %cst_9 = arith.constant dense<0.000000e+00> : vector<16xf32>
    %21 = vector.multi_reduction <add>, %20, %cst_9 [1] : vector<16x16xf32> to vector<16xf32>
    %22 = vector.shape_cast %21 : vector<16xf32> to vector<16x1xf32>
    %23 = tpu.reciprocal %22 : vector<16x1xf32> -> vector<16x1xf32>
    %24 = vector.broadcast %23 : vector<16x1xf32> to vector<16x16xf32>
    %25 = arith.mulf %20, %24 : vector<16x16xf32>
    %cst_10 = arith.constant dense<0.000000e+00> : vector<16x16xf32>
    %26 = tpu.matmul %25, %6, %cst_10 {dimension_numbers = #tpu.dot_dimension_numbers<[1], [0], [0], [1], [0, 0, 1, 1], [], []>} : vector<16x16xf32>, vector<16x16xf32>, vector<16x16xf32> -> vector<16x16xf32>
    %27 = vector.extract_strided_slice %1 {offsets = [0, 16], sizes = [16, 16], strides = [1, 1]} : vector<16x192xf32> to vector<16x16xf32>
    %28 = vector.extract_strided_slice %1 {offsets = [0, 80], sizes = [16, 16], strides = [1, 1]} : vector<16x192xf32> to vector<16x16xf32>
    %29 = vector.extract_strided_slice %1 {offsets = [0, 144], sizes = [16, 16], strides = [1, 1]} : vector<16x192xf32> to vector<16x16xf32>
    %cst_11 = arith.constant dense<0.000000e+00> : vector<16x16xf32>
    %30 = tpu.matmul %27, %28, %cst_11 {dimension_numbers = #tpu.dot_dimension_numbers<[1], [1], [0], [0], [0, 0, 1, 0], [], []>} : vector<16x16xf32>, vector<16x16xf32>, vector<16x16xf32> -> vector<16x16xf32>
    %cst_12 = arith.constant 2.500000e-01 : f32
    %31 = vector.broadcast %cst_12 : f32 to vector<16x16xf32>
    %32 = arith.mulf %30, %31 : vector<16x16xf32>
    %cst_13 = arith.constant 5.000000e-01 : f32
    %33 = vector.broadcast %cst_13 : f32 to vector<1x16xf32>
    %34 = arith.cmpf ogt, %3, %33 : vector<1x16xf32>
    %cst_14 = arith.constant -1.000000e+09 : f32
    %35 = vector.shape_cast %34 : vector<1x16xi1> to vector<1x16xi1>
    %36 = vector.broadcast %35 : vector<1x16xi1> to vector<16x16xi1>
    %37 = vector.broadcast %cst_14 : f32 to vector<16x16xf32>
    %38 = arith.select %36, %37, %32 : vector<16x16xi1>, vector<16x16xf32>
    %cst_15 = arith.constant dense<0xFF800000> : vector<16xf32>
    %39 = vector.multi_reduction <maximumf>, %38, %cst_15 [1] : vector<16x16xf32> to vector<16xf32>
    %40 = vector.shape_cast %39 : vector<16xf32> to vector<16x1xf32>
    %41 = vector.broadcast %40 : vector<16x1xf32> to vector<16x16xf32>
    %42 = arith.subf %38, %41 : vector<16x16xf32>
    %43 = math.exp %42 : vector<16x16xf32>
    %cst_16 = arith.constant dense<0.000000e+00> : vector<16xf32>
    %44 = vector.multi_reduction <add>, %43, %cst_16 [1] : vector<16x16xf32> to vector<16xf32>
    %45 = vector.shape_cast %44 : vector<16xf32> to vector<16x1xf32>
    %46 = tpu.reciprocal %45 : vector<16x1xf32> -> vector<16x1xf32>
    %47 = vector.broadcast %46 : vector<16x1xf32> to vector<16x16xf32>
    %48 = arith.mulf %43, %47 : vector<16x16xf32>
    %cst_17 = arith.constant dense<0.000000e+00> : vector<16x16xf32>
    %49 = tpu.matmul %48, %29, %cst_17 {dimension_numbers = #tpu.dot_dimension_numbers<[1], [0], [0], [1], [0, 0, 1, 1], [], []>} : vector<16x16xf32>, vector<16x16xf32>, vector<16x16xf32> -> vector<16x16xf32>
    %50 = vector.extract_strided_slice %1 {offsets = [0, 32], sizes = [16, 16], strides = [1, 1]} : vector<16x192xf32> to vector<16x16xf32>
    %51 = vector.extract_strided_slice %1 {offsets = [0, 96], sizes = [16, 16], strides = [1, 1]} : vector<16x192xf32> to vector<16x16xf32>
    %52 = vector.extract_strided_slice %1 {offsets = [0, 160], sizes = [16, 16], strides = [1, 1]} : vector<16x192xf32> to vector<16x16xf32>
    %cst_18 = arith.constant dense<0.000000e+00> : vector<16x16xf32>
    %53 = tpu.matmul %50, %51, %cst_18 {dimension_numbers = #tpu.dot_dimension_numbers<[1], [1], [0], [0], [0, 0, 1, 0], [], []>} : vector<16x16xf32>, vector<16x16xf32>, vector<16x16xf32> -> vector<16x16xf32>
    %cst_19 = arith.constant 2.500000e-01 : f32
    %54 = vector.broadcast %cst_19 : f32 to vector<16x16xf32>
    %55 = arith.mulf %53, %54 : vector<16x16xf32>
    %cst_20 = arith.constant 5.000000e-01 : f32
    %56 = vector.broadcast %cst_20 : f32 to vector<1x16xf32>
    %57 = arith.cmpf ogt, %3, %56 : vector<1x16xf32>
    %cst_21 = arith.constant -1.000000e+09 : f32
    %58 = vector.shape_cast %57 : vector<1x16xi1> to vector<1x16xi1>
    %59 = vector.broadcast %58 : vector<1x16xi1> to vector<16x16xi1>
    %60 = vector.broadcast %cst_21 : f32 to vector<16x16xf32>
    %61 = arith.select %59, %60, %55 : vector<16x16xi1>, vector<16x16xf32>
    %cst_22 = arith.constant dense<0xFF800000> : vector<16xf32>
    %62 = vector.multi_reduction <maximumf>, %61, %cst_22 [1] : vector<16x16xf32> to vector<16xf32>
    %63 = vector.shape_cast %62 : vector<16xf32> to vector<16x1xf32>
    %64 = vector.broadcast %63 : vector<16x1xf32> to vector<16x16xf32>
    %65 = arith.subf %61, %64 : vector<16x16xf32>
    %66 = math.exp %65 : vector<16x16xf32>
    %cst_23 = arith.constant dense<0.000000e+00> : vector<16xf32>
    %67 = vector.multi_reduction <add>, %66, %cst_23 [1] : vector<16x16xf32> to vector<16xf32>
    %68 = vector.shape_cast %67 : vector<16xf32> to vector<16x1xf32>
    %69 = tpu.reciprocal %68 : vector<16x1xf32> -> vector<16x1xf32>
    %70 = vector.broadcast %69 : vector<16x1xf32> to vector<16x16xf32>
    %71 = arith.mulf %66, %70 : vector<16x16xf32>
    %cst_24 = arith.constant dense<0.000000e+00> : vector<16x16xf32>
    %72 = tpu.matmul %71, %52, %cst_24 {dimension_numbers = #tpu.dot_dimension_numbers<[1], [0], [0], [1], [0, 0, 1, 1], [], []>} : vector<16x16xf32>, vector<16x16xf32>, vector<16x16xf32> -> vector<16x16xf32>
    %73 = vector.extract_strided_slice %1 {offsets = [0, 48], sizes = [16, 16], strides = [1, 1]} : vector<16x192xf32> to vector<16x16xf32>
    %74 = vector.extract_strided_slice %1 {offsets = [0, 112], sizes = [16, 16], strides = [1, 1]} : vector<16x192xf32> to vector<16x16xf32>
    %75 = vector.extract_strided_slice %1 {offsets = [0, 176], sizes = [16, 16], strides = [1, 1]} : vector<16x192xf32> to vector<16x16xf32>
    %cst_25 = arith.constant dense<0.000000e+00> : vector<16x16xf32>
    %76 = tpu.matmul %73, %74, %cst_25 {dimension_numbers = #tpu.dot_dimension_numbers<[1], [1], [0], [0], [0, 0, 1, 0], [], []>} : vector<16x16xf32>, vector<16x16xf32>, vector<16x16xf32> -> vector<16x16xf32>
    %cst_26 = arith.constant 2.500000e-01 : f32
    %77 = vector.broadcast %cst_26 : f32 to vector<16x16xf32>
    %78 = arith.mulf %76, %77 : vector<16x16xf32>
    %cst_27 = arith.constant 5.000000e-01 : f32
    %79 = vector.broadcast %cst_27 : f32 to vector<1x16xf32>
    %80 = arith.cmpf ogt, %3, %79 : vector<1x16xf32>
    %cst_28 = arith.constant -1.000000e+09 : f32
    %81 = vector.shape_cast %80 : vector<1x16xi1> to vector<1x16xi1>
    %82 = vector.broadcast %81 : vector<1x16xi1> to vector<16x16xi1>
    %83 = vector.broadcast %cst_28 : f32 to vector<16x16xf32>
    %84 = arith.select %82, %83, %78 : vector<16x16xi1>, vector<16x16xf32>
    %cst_29 = arith.constant dense<0xFF800000> : vector<16xf32>
    %85 = vector.multi_reduction <maximumf>, %84, %cst_29 [1] : vector<16x16xf32> to vector<16xf32>
    %86 = vector.shape_cast %85 : vector<16xf32> to vector<16x1xf32>
    %87 = vector.broadcast %86 : vector<16x1xf32> to vector<16x16xf32>
    %88 = arith.subf %84, %87 : vector<16x16xf32>
    %89 = math.exp %88 : vector<16x16xf32>
    %cst_30 = arith.constant dense<0.000000e+00> : vector<16xf32>
    %90 = vector.multi_reduction <add>, %89, %cst_30 [1] : vector<16x16xf32> to vector<16xf32>
    %91 = vector.shape_cast %90 : vector<16xf32> to vector<16x1xf32>
    %92 = tpu.reciprocal %91 : vector<16x1xf32> -> vector<16x1xf32>
    %93 = vector.broadcast %92 : vector<16x1xf32> to vector<16x16xf32>
    %94 = arith.mulf %89, %93 : vector<16x16xf32>
    %cst_31 = arith.constant dense<0.000000e+00> : vector<16x16xf32>
    %95 = tpu.matmul %94, %75, %cst_31 {dimension_numbers = #tpu.dot_dimension_numbers<[1], [0], [0], [1], [0, 0, 1, 1], [], []>} : vector<16x16xf32>, vector<16x16xf32>, vector<16x16xf32> -> vector<16x16xf32>
    %96 = tpu.concatenate %26, %49, %72, %95 in 1 : vector<16x16xf32>, vector<16x16xf32>, vector<16x16xf32>, vector<16x16xf32> -> vector<16x64xf32>
    %c0_32 = arith.constant 0 : index
    %c0_33 = arith.constant 0 : index
    %c0_34 = arith.constant 0 : index
    %97 = vector.load %arg3[%c0_32, %c0_33, %c0_34] : memref<1x16x64xf32, #tpu.memory_space<vmem>>, vector<1x16x64xf32>
    %98 = vector.shape_cast %97 : vector<1x16x64xf32> to vector<16x64xf32>
    %99 = vector.shape_cast %96 : vector<16x64xf32> to vector<1x16x64xf32>
    tpu.vector_store %arg3[%c0_32, %c0_33, %c0_34], %99 {strides = array<i32>} : memref<1x16x64xf32, #tpu.memory_space<vmem>>, vector<1x16x64xf32>,
    return
  }
  func.func @transform_0(%arg0: i32) -> (i32, i32, i32) {
    %c0_i32 = arith.constant 0 : i32
    %c0_i32_0 = arith.constant 0 : i32
    %c0_i32_1 = arith.constant 0 : i32
    return %arg0, %c0_i32, %c0_i32_0 : i32, i32, i32
  }
  func.func @transform_1(%arg0: i32) -> (i32, i32, i32) {
    %c0_i32 = arith.constant 0 : i32
    %c0_i32_0 = arith.constant 0 : i32
    %c0_i32_1 = arith.constant 0 : i32
    return %arg0, %c0_i32, %c0_i32_0 : i32, i32, i32
  }
  func.func @transform_2(%arg0: i32) -> (i32, i32, i32) {
    %c0_i32 = arith.constant 0 : i32
    %c0_i32_0 = arith.constant 0 : i32
    %c0_i32_1 = arith.constant 0 : i32
    return %arg0, %c0_i32, %c0_i32_0 : i32, i32, i32
  }
}

module attributes {stable_mosaic.version = 11 : i64} {
  func.func @_proj_add_ln_kernel(%arg0: i32, %arg1: memref<32x64xf32, #tpu.memory_space<vmem>>, %arg2: memref<64x64xf32, #tpu.memory_space<vmem>>, %arg3: memref<1x64xf32, #tpu.memory_space<vmem>>, %arg4: memref<32x64xf32, #tpu.memory_space<vmem>>, %arg5: memref<1x64xf32, #tpu.memory_space<vmem>>, %arg6: memref<1x64xf32, #tpu.memory_space<vmem>>, %arg7: memref<32x64xf32, #tpu.memory_space<vmem>>) attributes {dimension_semantics = [#tpu.dimension_semantics<parallel>], iteration_bounds = array<i64: 1>, scalar_prefetch = 0 : i64, scratch_operands = 0 : i64, tpu.core_type = #tpu.core_type<tc>, window_params = [{transform_indices = @transform_0, window_bounds = array<i64: 32, 64>}, {pipeline_mode = #tpu.pipeline_mode<synchronous>, transform_indices = @transform_1, window_bounds = array<i64: 64, 64>}, {pipeline_mode = #tpu.pipeline_mode<synchronous>, transform_indices = @transform_2, window_bounds = array<i64: 1, 64>}, {transform_indices = @transform_3, window_bounds = array<i64: 32, 64>}, {pipeline_mode = #tpu.pipeline_mode<synchronous>, transform_indices = @transform_4, window_bounds = array<i64: 1, 64>}, {pipeline_mode = #tpu.pipeline_mode<synchronous>, transform_indices = @transform_5, window_bounds = array<i64: 1, 64>}, {transform_indices = @transform_6, window_bounds = array<i64: 32, 64>}]} {
    %c0 = arith.constant 0 : index
    %c0_0 = arith.constant 0 : index
    %0 = vector.load %arg1[%c0, %c0_0] : memref<32x64xf32, #tpu.memory_space<vmem>>, vector<32x64xf32>
    %c0_1 = arith.constant 0 : index
    %c0_2 = arith.constant 0 : index
    %1 = vector.load %arg2[%c0_1, %c0_2] : memref<64x64xf32, #tpu.memory_space<vmem>>, vector<64x64xf32>
    %cst = arith.constant dense<0.000000e+00> : vector<32x64xf32>
    %2 = tpu.matmul %0, %1, %cst {dimension_numbers = #tpu.dot_dimension_numbers<[1], [0], [0], [1], [0, 0, 1, 1], [], []>} : vector<32x64xf32>, vector<64x64xf32>, vector<32x64xf32> -> vector<32x64xf32>
    %c0_3 = arith.constant 0 : index
    %c0_4 = arith.constant 0 : index
    %3 = vector.load %arg3[%c0_3, %c0_4] : memref<1x64xf32, #tpu.memory_space<vmem>>, vector<1x64xf32>
    %4 = vector.broadcast %3 : vector<1x64xf32> to vector<32x64xf32>
    %5 = arith.addf %2, %4 : vector<32x64xf32>
    %c0_5 = arith.constant 0 : index
    %c0_6 = arith.constant 0 : index
    %6 = vector.load %arg4[%c0_5, %c0_6] : memref<32x64xf32, #tpu.memory_space<vmem>>, vector<32x64xf32>
    %7 = arith.addf %5, %6 : vector<32x64xf32>
    %cst_7 = arith.constant dense<0.000000e+00> : vector<32xf32>
    %8 = vector.multi_reduction <add>, %7, %cst_7 [1] : vector<32x64xf32> to vector<32xf32>
    %9 = vector.shape_cast %8 : vector<32xf32> to vector<32x1xf32>
    %cst_8 = arith.constant 6.400000e+01 : f32
    %10 = vector.broadcast %cst_8 : f32 to vector<32x1xf32>
    %11 = arith.divf %9, %10 : vector<32x1xf32>
    %12 = vector.broadcast %11 : vector<32x1xf32> to vector<32x64xf32>
    %13 = arith.subf %7, %12 : vector<32x64xf32>
    %14 = arith.mulf %13, %13 : vector<32x64xf32>
    %cst_9 = arith.constant dense<0.000000e+00> : vector<32xf32>
    %15 = vector.multi_reduction <add>, %14, %cst_9 [1] : vector<32x64xf32> to vector<32xf32>
    %16 = vector.shape_cast %15 : vector<32xf32> to vector<32x1xf32>
    %cst_10 = arith.constant 6.400000e+01 : f32
    %17 = vector.broadcast %cst_10 : f32 to vector<32x1xf32>
    %18 = arith.divf %16, %17 : vector<32x1xf32>
    %cst_11 = arith.constant 9.99999997E-7 : f32
    %19 = vector.broadcast %cst_11 : f32 to vector<32x1xf32>
    %20 = arith.addf %18, %19 : vector<32x1xf32>
    %21 = math.rsqrt %20 : vector<32x1xf32>
    %22 = vector.broadcast %21 : vector<32x1xf32> to vector<32x64xf32>
    %23 = arith.mulf %13, %22 : vector<32x64xf32>
    %c0_12 = arith.constant 0 : index
    %c0_13 = arith.constant 0 : index
    %24 = vector.load %arg5[%c0_12, %c0_13] : memref<1x64xf32, #tpu.memory_space<vmem>>, vector<1x64xf32>
    %25 = vector.broadcast %24 : vector<1x64xf32> to vector<32x64xf32>
    %26 = arith.mulf %23, %25 : vector<32x64xf32>
    %c0_14 = arith.constant 0 : index
    %c0_15 = arith.constant 0 : index
    %27 = vector.load %arg6[%c0_14, %c0_15] : memref<1x64xf32, #tpu.memory_space<vmem>>, vector<1x64xf32>
    %28 = vector.broadcast %27 : vector<1x64xf32> to vector<32x64xf32>
    %29 = arith.addf %26, %28 : vector<32x64xf32>
    %c0_16 = arith.constant 0 : index
    %c0_17 = arith.constant 0 : index
    %30 = vector.load %arg7[%c0_16, %c0_17] : memref<32x64xf32, #tpu.memory_space<vmem>>, vector<32x64xf32>
    tpu.vector_store %arg7[%c0_16, %c0_17], %29 {strides = array<i32>} : memref<32x64xf32, #tpu.memory_space<vmem>>, vector<32x64xf32>,
    return
  }
  func.func @transform_0(%arg0: i32) -> (i32, i32) {
    %c0_i32 = arith.constant 0 : i32
    %c0_i32_0 = arith.constant 0 : i32
    return %arg0, %c0_i32 : i32, i32
  }
  func.func @transform_1(%arg0: i32) -> (i32, i32) {
    %c0_i32 = arith.constant 0 : i32
    %c0_i32_0 = arith.constant 0 : i32
    %c0_i32_1 = arith.constant 0 : i32
    return %c0_i32, %c0_i32_0 : i32, i32
  }
  func.func @transform_2(%arg0: i32) -> (i32, i32) {
    %c0_i32 = arith.constant 0 : i32
    %c0_i32_0 = arith.constant 0 : i32
    %c0_i32_1 = arith.constant 0 : i32
    return %c0_i32, %c0_i32_0 : i32, i32
  }
  func.func @transform_3(%arg0: i32) -> (i32, i32) {
    %c0_i32 = arith.constant 0 : i32
    %c0_i32_0 = arith.constant 0 : i32
    return %arg0, %c0_i32 : i32, i32
  }
  func.func @transform_4(%arg0: i32) -> (i32, i32) {
    %c0_i32 = arith.constant 0 : i32
    %c0_i32_0 = arith.constant 0 : i32
    %c0_i32_1 = arith.constant 0 : i32
    return %c0_i32, %c0_i32_0 : i32, i32
  }
  func.func @transform_5(%arg0: i32) -> (i32, i32) {
    %c0_i32 = arith.constant 0 : i32
    %c0_i32_0 = arith.constant 0 : i32
    %c0_i32_1 = arith.constant 0 : i32
    return %c0_i32, %c0_i32_0 : i32, i32
  }
  func.func @transform_6(%arg0: i32) -> (i32, i32) {
    %c0_i32 = arith.constant 0 : i32
    %c0_i32_0 = arith.constant 0 : i32
    return %arg0, %c0_i32 : i32, i32
  }
}

module attributes {stable_mosaic.version = 11 : i64} {
  func.func @_ffn_add_ln_kernel(%arg0: i32, %arg1: memref<32x64xf32, #tpu.memory_space<vmem>>, %arg2: memref<64x128xf32, #tpu.memory_space<vmem>>, %arg3: memref<1x128xf32, #tpu.memory_space<vmem>>, %arg4: memref<128x64xf32, #tpu.memory_space<vmem>>, %arg5: memref<1x64xf32, #tpu.memory_space<vmem>>, %arg6: memref<1x64xf32, #tpu.memory_space<vmem>>, %arg7: memref<1x64xf32, #tpu.memory_space<vmem>>, %arg8: memref<32x64xf32, #tpu.memory_space<vmem>>) attributes {dimension_semantics = [#tpu.dimension_semantics<parallel>], iteration_bounds = array<i64: 1>, scalar_prefetch = 0 : i64, scratch_operands = 0 : i64, tpu.core_type = #tpu.core_type<tc>, window_params = [{transform_indices = @transform_0, window_bounds = array<i64: 32, 64>}, {pipeline_mode = #tpu.pipeline_mode<synchronous>, transform_indices = @transform_1, window_bounds = array<i64: 64, 128>}, {pipeline_mode = #tpu.pipeline_mode<synchronous>, transform_indices = @transform_2, window_bounds = array<i64: 1, 128>}, {pipeline_mode = #tpu.pipeline_mode<synchronous>, transform_indices = @transform_3, window_bounds = array<i64: 128, 64>}, {pipeline_mode = #tpu.pipeline_mode<synchronous>, transform_indices = @transform_4, window_bounds = array<i64: 1, 64>}, {pipeline_mode = #tpu.pipeline_mode<synchronous>, transform_indices = @transform_5, window_bounds = array<i64: 1, 64>}, {pipeline_mode = #tpu.pipeline_mode<synchronous>, transform_indices = @transform_6, window_bounds = array<i64: 1, 64>}, {transform_indices = @transform_7, window_bounds = array<i64: 32, 64>}]} {
    %c0 = arith.constant 0 : index
    %c0_0 = arith.constant 0 : index
    %0 = vector.load %arg1[%c0, %c0_0] : memref<32x64xf32, #tpu.memory_space<vmem>>, vector<32x64xf32>
    %c0_1 = arith.constant 0 : index
    %c0_2 = arith.constant 0 : index
    %1 = vector.load %arg2[%c0_1, %c0_2] : memref<64x128xf32, #tpu.memory_space<vmem>>, vector<64x128xf32>
    %cst = arith.constant dense<0.000000e+00> : vector<32x128xf32>
    %2 = tpu.matmul %0, %1, %cst {dimension_numbers = #tpu.dot_dimension_numbers<[1], [0], [0], [1], [0, 0, 1, 1], [], []>} : vector<32x64xf32>, vector<64x128xf32>, vector<32x128xf32> -> vector<32x128xf32>
    %c0_3 = arith.constant 0 : index
    %c0_4 = arith.constant 0 : index
    %3 = vector.load %arg3[%c0_3, %c0_4] : memref<1x128xf32, #tpu.memory_space<vmem>>, vector<1x128xf32>
    %4 = vector.broadcast %3 : vector<1x128xf32> to vector<32x128xf32>
    %5 = arith.addf %2, %4 : vector<32x128xf32>
    %cst_5 = arith.constant 0.000000e+00 : f32
    %6 = vector.broadcast %cst_5 : f32 to vector<32x128xf32>
    %7 = arith.maximumf %5, %6 : vector<32x128xf32>
    %c0_6 = arith.constant 0 : index
    %c0_7 = arith.constant 0 : index
    %8 = vector.load %arg4[%c0_6, %c0_7] : memref<128x64xf32, #tpu.memory_space<vmem>>, vector<128x64xf32>
    %cst_8 = arith.constant dense<0.000000e+00> : vector<32x64xf32>
    %9 = tpu.matmul %7, %8, %cst_8 {dimension_numbers = #tpu.dot_dimension_numbers<[1], [0], [0], [1], [0, 0, 1, 1], [], []>} : vector<32x128xf32>, vector<128x64xf32>, vector<32x64xf32> -> vector<32x64xf32>
    %c0_9 = arith.constant 0 : index
    %c0_10 = arith.constant 0 : index
    %10 = vector.load %arg5[%c0_9, %c0_10] : memref<1x64xf32, #tpu.memory_space<vmem>>, vector<1x64xf32>
    %11 = vector.broadcast %10 : vector<1x64xf32> to vector<32x64xf32>
    %12 = arith.addf %9, %11 : vector<32x64xf32>
    %13 = arith.addf %0, %12 : vector<32x64xf32>
    %cst_11 = arith.constant dense<0.000000e+00> : vector<32xf32>
    %14 = vector.multi_reduction <add>, %13, %cst_11 [1] : vector<32x64xf32> to vector<32xf32>
    %15 = vector.shape_cast %14 : vector<32xf32> to vector<32x1xf32>
    %cst_12 = arith.constant 6.400000e+01 : f32
    %16 = vector.broadcast %cst_12 : f32 to vector<32x1xf32>
    %17 = arith.divf %15, %16 : vector<32x1xf32>
    %18 = vector.broadcast %17 : vector<32x1xf32> to vector<32x64xf32>
    %19 = arith.subf %13, %18 : vector<32x64xf32>
    %20 = arith.mulf %19, %19 : vector<32x64xf32>
    %cst_13 = arith.constant dense<0.000000e+00> : vector<32xf32>
    %21 = vector.multi_reduction <add>, %20, %cst_13 [1] : vector<32x64xf32> to vector<32xf32>
    %22 = vector.shape_cast %21 : vector<32xf32> to vector<32x1xf32>
    %cst_14 = arith.constant 6.400000e+01 : f32
    %23 = vector.broadcast %cst_14 : f32 to vector<32x1xf32>
    %24 = arith.divf %22, %23 : vector<32x1xf32>
    %cst_15 = arith.constant 9.99999997E-7 : f32
    %25 = vector.broadcast %cst_15 : f32 to vector<32x1xf32>
    %26 = arith.addf %24, %25 : vector<32x1xf32>
    %27 = math.rsqrt %26 : vector<32x1xf32>
    %28 = vector.broadcast %27 : vector<32x1xf32> to vector<32x64xf32>
    %29 = arith.mulf %19, %28 : vector<32x64xf32>
    %c0_16 = arith.constant 0 : index
    %c0_17 = arith.constant 0 : index
    %30 = vector.load %arg6[%c0_16, %c0_17] : memref<1x64xf32, #tpu.memory_space<vmem>>, vector<1x64xf32>
    %31 = vector.broadcast %30 : vector<1x64xf32> to vector<32x64xf32>
    %32 = arith.mulf %29, %31 : vector<32x64xf32>
    %c0_18 = arith.constant 0 : index
    %c0_19 = arith.constant 0 : index
    %33 = vector.load %arg7[%c0_18, %c0_19] : memref<1x64xf32, #tpu.memory_space<vmem>>, vector<1x64xf32>
    %34 = vector.broadcast %33 : vector<1x64xf32> to vector<32x64xf32>
    %35 = arith.addf %32, %34 : vector<32x64xf32>
    %c0_20 = arith.constant 0 : index
    %c0_21 = arith.constant 0 : index
    %36 = vector.load %arg8[%c0_20, %c0_21] : memref<32x64xf32, #tpu.memory_space<vmem>>, vector<32x64xf32>
    tpu.vector_store %arg8[%c0_20, %c0_21], %35 {strides = array<i32>} : memref<32x64xf32, #tpu.memory_space<vmem>>, vector<32x64xf32>,
    return
  }
  func.func @transform_0(%arg0: i32) -> (i32, i32) {
    %c0_i32 = arith.constant 0 : i32
    %c0_i32_0 = arith.constant 0 : i32
    return %arg0, %c0_i32 : i32, i32
  }
  func.func @transform_1(%arg0: i32) -> (i32, i32) {
    %c0_i32 = arith.constant 0 : i32
    %c0_i32_0 = arith.constant 0 : i32
    %c0_i32_1 = arith.constant 0 : i32
    return %c0_i32, %c0_i32_0 : i32, i32
  }
  func.func @transform_2(%arg0: i32) -> (i32, i32) {
    %c0_i32 = arith.constant 0 : i32
    %c0_i32_0 = arith.constant 0 : i32
    %c0_i32_1 = arith.constant 0 : i32
    return %c0_i32, %c0_i32_0 : i32, i32
  }
  func.func @transform_3(%arg0: i32) -> (i32, i32) {
    %c0_i32 = arith.constant 0 : i32
    %c0_i32_0 = arith.constant 0 : i32
    %c0_i32_1 = arith.constant 0 : i32
    return %c0_i32, %c0_i32_0 : i32, i32
  }
  func.func @transform_4(%arg0: i32) -> (i32, i32) {
    %c0_i32 = arith.constant 0 : i32
    %c0_i32_0 = arith.constant 0 : i32
    %c0_i32_1 = arith.constant 0 : i32
    return %c0_i32, %c0_i32_0 : i32, i32
  }
  func.func @transform_5(%arg0: i32) -> (i32, i32) {
    %c0_i32 = arith.constant 0 : i32
    %c0_i32_0 = arith.constant 0 : i32
    %c0_i32_1 = arith.constant 0 : i32
    return %c0_i32, %c0_i32_0 : i32, i32
  }
  func.func @transform_6(%arg0: i32) -> (i32, i32) {
    %c0_i32 = arith.constant 0 : i32
    %c0_i32_0 = arith.constant 0 : i32
    %c0_i32_1 = arith.constant 0 : i32
    return %c0_i32, %c0_i32_0 : i32, i32
  }
  func.func @transform_7(%arg0: i32) -> (i32, i32) {
    %c0_i32 = arith.constant 0 : i32
    %c0_i32_0 = arith.constant 0 : i32
    return %arg0, %c0_i32 : i32, i32
  }
}

module attributes {stable_mosaic.version = 11 : i64} {
  func.func @_ffn_add_ln_kernel(%arg0: i32, %arg1: memref<32x64xf32, #tpu.memory_space<vmem>>, %arg2: memref<64x128xf32, #tpu.memory_space<vmem>>, %arg3: memref<1x128xf32, #tpu.memory_space<vmem>>, %arg4: memref<128x64xf32, #tpu.memory_space<vmem>>, %arg5: memref<1x64xf32, #tpu.memory_space<vmem>>, %arg6: memref<1x64xf32, #tpu.memory_space<vmem>>, %arg7: memref<1x64xf32, #tpu.memory_space<vmem>>, %arg8: memref<32x64xf32, #tpu.memory_space<vmem>>) attributes {dimension_semantics = [#tpu.dimension_semantics<parallel>], iteration_bounds = array<i64: 1>, scalar_prefetch = 0 : i64, scratch_operands = 0 : i64, tpu.core_type = #tpu.core_type<tc>, window_params = [{transform_indices = @transform_0, window_bounds = array<i64: 32, 64>}, {pipeline_mode = #tpu.pipeline_mode<synchronous>, transform_indices = @transform_1, window_bounds = array<i64: 64, 128>}, {pipeline_mode = #tpu.pipeline_mode<synchronous>, transform_indices = @transform_2, window_bounds = array<i64: 1, 128>}, {pipeline_mode = #tpu.pipeline_mode<synchronous>, transform_indices = @transform_3, window_bounds = array<i64: 128, 64>}, {pipeline_mode = #tpu.pipeline_mode<synchronous>, transform_indices = @transform_4, window_bounds = array<i64: 1, 64>}, {pipeline_mode = #tpu.pipeline_mode<synchronous>, transform_indices = @transform_5, window_bounds = array<i64: 1, 64>}, {pipeline_mode = #tpu.pipeline_mode<synchronous>, transform_indices = @transform_6, window_bounds = array<i64: 1, 64>}, {transform_indices = @transform_7, window_bounds = array<i64: 32, 64>}]} {
    %c0 = arith.constant 0 : index
    %c0_0 = arith.constant 0 : index
    %0 = vector.load %arg1[%c0, %c0_0] : memref<32x64xf32, #tpu.memory_space<vmem>>, vector<32x64xf32>
    %c0_1 = arith.constant 0 : index
    %c0_2 = arith.constant 0 : index
    %1 = vector.load %arg2[%c0_1, %c0_2] : memref<64x128xf32, #tpu.memory_space<vmem>>, vector<64x128xf32>
    %cst = arith.constant dense<0.000000e+00> : vector<32x128xf32>
    %2 = tpu.matmul %0, %1, %cst {dimension_numbers = #tpu.dot_dimension_numbers<[1], [0], [0], [1], [0, 0, 1, 1], [], []>} : vector<32x64xf32>, vector<64x128xf32>, vector<32x128xf32> -> vector<32x128xf32>
    %c0_3 = arith.constant 0 : index
    %c0_4 = arith.constant 0 : index
    %3 = vector.load %arg3[%c0_3, %c0_4] : memref<1x128xf32, #tpu.memory_space<vmem>>, vector<1x128xf32>
    %4 = vector.broadcast %3 : vector<1x128xf32> to vector<32x128xf32>
    %5 = arith.addf %2, %4 : vector<32x128xf32>
    %cst_5 = arith.constant 0.000000e+00 : f32
    %6 = vector.broadcast %cst_5 : f32 to vector<32x128xf32>
    %7 = arith.maximumf %5, %6 : vector<32x128xf32>
    %c0_6 = arith.constant 0 : index
    %c0_7 = arith.constant 0 : index
    %8 = vector.load %arg4[%c0_6, %c0_7] : memref<128x64xf32, #tpu.memory_space<vmem>>, vector<128x64xf32>
    %cst_8 = arith.constant dense<0.000000e+00> : vector<32x64xf32>
    %9 = tpu.matmul %7, %8, %cst_8 {dimension_numbers = #tpu.dot_dimension_numbers<[1], [0], [0], [1], [0, 0, 1, 1], [], []>} : vector<32x128xf32>, vector<128x64xf32>, vector<32x64xf32> -> vector<32x64xf32>
    %c0_9 = arith.constant 0 : index
    %c0_10 = arith.constant 0 : index
    %10 = vector.load %arg5[%c0_9, %c0_10] : memref<1x64xf32, #tpu.memory_space<vmem>>, vector<1x64xf32>
    %11 = vector.broadcast %10 : vector<1x64xf32> to vector<32x64xf32>
    %12 = arith.addf %9, %11 : vector<32x64xf32>
    %13 = arith.addf %0, %12 : vector<32x64xf32>
    %cst_11 = arith.constant dense<0.000000e+00> : vector<32xf32>
    %14 = vector.multi_reduction <add>, %13, %cst_11 [1] : vector<32x64xf32> to vector<32xf32>
    %15 = vector.shape_cast %14 : vector<32xf32> to vector<32x1xf32>
    %cst_12 = arith.constant 6.400000e+01 : f32
    %16 = vector.broadcast %cst_12 : f32 to vector<32x1xf32>
    %17 = arith.divf %15, %16 : vector<32x1xf32>
    %18 = vector.broadcast %17 : vector<32x1xf32> to vector<32x64xf32>
    %19 = arith.subf %13, %18 : vector<32x64xf32>
    %20 = arith.mulf %19, %19 : vector<32x64xf32>
    %cst_13 = arith.constant dense<0.000000e+00> : vector<32xf32>
    %21 = vector.multi_reduction <add>, %20, %cst_13 [1] : vector<32x64xf32> to vector<32xf32>
    %22 = vector.shape_cast %21 : vector<32xf32> to vector<32x1xf32>
    %cst_14 = arith.constant 6.400000e+01 : f32
    %23 = vector.broadcast %cst_14 : f32 to vector<32x1xf32>
    %24 = arith.divf %22, %23 : vector<32x1xf32>
    %cst_15 = arith.constant 9.99999997E-7 : f32
    %25 = vector.broadcast %cst_15 : f32 to vector<32x1xf32>
    %26 = arith.addf %24, %25 : vector<32x1xf32>
    %27 = math.rsqrt %26 : vector<32x1xf32>
    %28 = vector.broadcast %27 : vector<32x1xf32> to vector<32x64xf32>
    %29 = arith.mulf %19, %28 : vector<32x64xf32>
    %c0_16 = arith.constant 0 : index
    %c0_17 = arith.constant 0 : index
    %30 = vector.load %arg6[%c0_16, %c0_17] : memref<1x64xf32, #tpu.memory_space<vmem>>, vector<1x64xf32>
    %31 = vector.broadcast %30 : vector<1x64xf32> to vector<32x64xf32>
    %32 = arith.mulf %29, %31 : vector<32x64xf32>
    %c0_18 = arith.constant 0 : index
    %c0_19 = arith.constant 0 : index
    %33 = vector.load %arg7[%c0_18, %c0_19] : memref<1x64xf32, #tpu.memory_space<vmem>>, vector<1x64xf32>
    %34 = vector.broadcast %33 : vector<1x64xf32> to vector<32x64xf32>
    %35 = arith.addf %32, %34 : vector<32x64xf32>
    %c0_20 = arith.constant 0 : index
    %c0_21 = arith.constant 0 : index
    %36 = vector.load %arg8[%c0_20, %c0_21] : memref<32x64xf32, #tpu.memory_space<vmem>>, vector<32x64xf32>
    tpu.vector_store %arg8[%c0_20, %c0_21], %35 {strides = array<i32>} : memref<32x64xf32, #tpu.memory_space<vmem>>, vector<32x64xf32>,
    return
  }
  func.func @transform_0(%arg0: i32) -> (i32, i32) {
    %c0_i32 = arith.constant 0 : i32
    %c0_i32_0 = arith.constant 0 : i32
    return %arg0, %c0_i32 : i32, i32
  }
  func.func @transform_1(%arg0: i32) -> (i32, i32) {
    %c0_i32 = arith.constant 0 : i32
    %c0_i32_0 = arith.constant 0 : i32
    %c0_i32_1 = arith.constant 0 : i32
    return %c0_i32, %c0_i32_0 : i32, i32
  }
  func.func @transform_2(%arg0: i32) -> (i32, i32) {
    %c0_i32 = arith.constant 0 : i32
    %c0_i32_0 = arith.constant 0 : i32
    %c0_i32_1 = arith.constant 0 : i32
    return %c0_i32, %c0_i32_0 : i32, i32
  }
  func.func @transform_3(%arg0: i32) -> (i32, i32) {
    %c0_i32 = arith.constant 0 : i32
    %c0_i32_0 = arith.constant 0 : i32
    %c0_i32_1 = arith.constant 0 : i32
    return %c0_i32, %c0_i32_0 : i32, i32
  }
  func.func @transform_4(%arg0: i32) -> (i32, i32) {
    %c0_i32 = arith.constant 0 : i32
    %c0_i32_0 = arith.constant 0 : i32
    %c0_i32_1 = arith.constant 0 : i32
    return %c0_i32, %c0_i32_0 : i32, i32
  }
  func.func @transform_5(%arg0: i32) -> (i32, i32) {
    %c0_i32 = arith.constant 0 : i32
    %c0_i32_0 = arith.constant 0 : i32
    %c0_i32_1 = arith.constant 0 : i32
    return %c0_i32, %c0_i32_0 : i32, i32
  }
  func.func @transform_6(%arg0: i32) -> (i32, i32) {
    %c0_i32 = arith.constant 0 : i32
    %c0_i32_0 = arith.constant 0 : i32
    %c0_i32_1 = arith.constant 0 : i32
    return %c0_i32, %c0_i32_0 : i32, i32
  }
  func.func @transform_7(%arg0: i32) -> (i32, i32) {
    %c0_i32 = arith.constant 0 : i32
    %c0_i32_0 = arith.constant 0 : i32
    return %arg0, %c0_i32 : i32, i32
  }
}

</mosaic_0001>

<llo_original>
// kernel: transformer_encoder.8
$region0: #{transformer_encoder.8}
  #allocation0 [shape = 'u32[]', space=smem, size = 0x4, offset = 0x4, fixed_abs, tag = 'smem constant byte address 0x4 - core index']
  #allocation1 [shape = 'u32[72,128]{1,0:T(1,128)}', space=vmem, size = 0x9000, scoped, tag = 'internal scratch']
  %s0 = inlined_call_operand.vmem [shape: f32[32,64], index: 0, kind: input, shape index: {}]
  %s1 = inlined_call_operand.vmem [shape: f32[64,192], index: 1, kind: input, shape index: {}]
  %s2 = inlined_call_operand.vmem [shape: f32[1,192], index: 2, kind: input, shape index: {}]
  %s3 = inlined_call_operand.vmem [shape: f32[32,192], index: 3, kind: output, shape index: {}]
  %s4 = sld [smem:[#allocation0]]
  $region22: #{transformer_encoder.8} parent=0
    _
  %s6 = ssub.s32 1, %s4
  %s7 = scalar_select 0, %s6, %s4
  // Predicated region
  $region2: #{transformer_encoder.8} parent=0 // pred_check
    _
  $region3: #{transformer_encoder.8} parent=0 // pred_check_branch
    %9 = sbr.rel (0) target = $region5
  $region4: #{transformer_encoder.8} parent=0 // pred_region
    _
  $region5: #{transformer_encoder.8} parent=0 // pred_fallthru
    _
  // Predicated region
  $region6: #{transformer_encoder.8} parent=0 // pred_check
    _
  $region7: #{transformer_encoder.8} parent=0 // pred_check_branch
    %11 = sbr.rel (0) target = $region9
  $region8: #{transformer_encoder.8} parent=0 // pred_region
    _
  $region9: #{transformer_encoder.8} parent=0 // pred_fallthru
    _
  // Predicated region
  $region10: #{transformer_encoder.8} parent=0 // pred_check
    _
  $region11: #{transformer_encoder.8} parent=0 // pred_check_branch
    %13 = sbr.rel (0) target = $region13
  $region12: #{transformer_encoder.8} parent=0 // pred_region
    _
  $region13: #{transformer_encoder.8} parent=0 // pred_fallthru
    _
  %v14 = vld [vmem:[%s0] sm:$0xff]
  %v15 = vld [vmem:[%s0 + $0x8] sm:$0xff]
  %v16 = vld [vmem:[%s0 + $0x10] sm:$0xff]
  %v17 = vld [vmem:[%s0 + $0x18] sm:$0xff]
  %v18 = vld [vmem:[%s1] sm:$0xff]
  %v19 = vld [vmem:[%s1 + $0x8] sm:$0xff]
  %v20 = vld [vmem:[%s1 + $0x10] sm:$0xff]
  %v21 = vld [vmem:[%s1 + $0x18] sm:$0xff]
  %v22 = vld [vmem:[%s1 + $0x20] sm:$0xff]
  %v23 = vld [vmem:[%s1 + $0x28] sm:$0xff]
  %v24 = vld [vmem:[%s1 + $0x30] sm:$0xff]
  %v25 = vld [vmem:[%s1 + $0x38] sm:$0xff]
  %v26 = vld [vmem:[%s1 + $0x40] sm:$0xff]
  %v27 = vld [vmem:[%s1 + $0x48] sm:$0xff]
  %v28 = vld [vmem:[%s1 + $0x50] sm:$0xff]
  %v29 = vld [vmem:[%s1 + $0x58] sm:$0xff]
  %v30 = vld [vmem:[%s1 + $0x60] sm:$0xff]
  %v31 = vld [vmem:[%s1 + $0x68] sm:$0xff]
  %v32 = vld [vmem:[%s1 + $0x70] sm:$0xff]
  %v33 = vld [vmem:[%s1 + $0x78] sm:$0xff]
  %v34 = vld [vmem:[%s2] sm:$0x3]
  %v36 = vperm.slane %v34, 0
  %v37 = vperm.slane %v34, 1
  %vm40 = vcmask 523264
  %v42 = vsel %vm40, %v14, 0
  %v45 = vsel %vm40, %v15, 0
  %v48 = vsel %vm40, %v16, 0
  %v51 = vsel %vm40, %v17, 0
  %53 = vmatpush.msra.mxu0 0.0
  %54 = vmatpush.msra.mxu0 0.0
  %55 = vmatpush.msra.mxu0 0.0
  %56 = vmatpush.msra.mxu0 0.0
  %57 = vmatpush.msra.mxu0 0.0
  %58 = vmatpush.msra.mxu0 0.0
  %59 = vmatpush.msra.mxu0 0.0
  %60 = vmatpush.msra.mxu0 0.0
  %61 = vmatpush.msra.mxu0 %v32
  %62 = vmatpush.msra.mxu0 %v30
  %63 = vmatpush.msra.mxu0 %v28
  %64 = vmatpush.msra.mxu0 %v26
  %65 = vmatpush.msra.mxu0 %v24
  %66 = vmatpush.msra.mxu0 %v22
  %67 = vmatpush.msra.mxu0 %v20
  %68 = vmatpush.msra.mxu0 %v18
  %69 = vmatmul.f32.gmra.mxu0 %v42
  %v70 = vpop.f32.mrf.mxu0
  %v71 = vadd.f32 %v36, %v70
  %72 = vmatmul.f32.gmra.mxu0 %v45
  %v73 = vpop.f32.mrf.mxu0
  %v74 = vadd.f32 %v36, %v73
  %75 = vmatmul.f32.gmra.mxu0 %v48
  %v76 = vpop.f32.mrf.mxu0
  %v77 = vadd.f32 %v36, %v76
  %78 = vmatmul.f32.gmra.mxu0 %v51
  %v79 = vpop.f32.mrf.mxu0
  %v80 = vadd.f32 %v36, %v79
  %81 = vdwg.mxu0
  %82 = vmatpush.msra.mxu0 0.0
  %83 = vmatpush.msra.mxu0 0.0
  %84 = vmatpush.msra.mxu0 0.0
  %85 = vmatpush.msra.mxu0 0.0
  %86 = vmatpush.msra.mxu0 0.0
  %87 = vmatpush.msra.mxu0 0.0
  %88 = vmatpush.msra.mxu0 0.0
  %89 = vmatpush.msra.mxu0 0.0
  %90 = vmatpush.msra.mxu0 %v33
  %91 = vmatpush.msra.mxu0 %v31
  %92 = vmatpush.msra.mxu0 %v29
  %93 = vmatpush.msra.mxu0 %v27
  %94 = vmatpush.msra.mxu0 %v25
  %95 = vmatpush.msra.mxu0 %v23
  %96 = vmatpush.msra.mxu0 %v21
  %97 = vmatpush.msra.mxu0 %v19
  %98 = vmatmul.f32.gmra.mxu0 %v42
  %v99 = vpop.f32.mrf.mxu0
  %v100 = vadd.f32 %v37, %v99
  %101 = vmatmul.f32.gmra.mxu0 %v45
  %v102 = vpop.f32.mrf.mxu0
  %v103 = vadd.f32 %v37, %v102
  %104 = vmatmul.f32.gmra.mxu0 %v48
  %v105 = vpop.f32.mrf.mxu0
  %v106 = vadd.f32 %v37, %v105
  %107 = vmatmul.f32.gmra.mxu0 %v51
  %v108 = vpop.f32.mrf.mxu0
  %v109 = vadd.f32 %v37, %v108
  %110 = vdwg.mxu0
  %111 = vst [vmem:[%s3] sm:$0xff] %v71
  %112 = vst.msk [vmem:[%s3 + $0x8] sm:$0xff] %vm40, %v100
  %113 = vst [vmem:[%s3 + $0x10] sm:$0xff] %v74
  %114 = vst.msk [vmem:[%s3 + $0x18] sm:$0xff] %vm40, %v103
  %115 = vst [vmem:[%s3 + $0x20] sm:$0xff] %v77
  %116 = vst.msk [vmem:[%s3 + $0x28] sm:$0xff] %vm40, %v106
  %117 = vst [vmem:[%s3 + $0x30] sm:$0xff] %v80
  %118 = vst.msk [vmem:[%s3 + $0x38] sm:$0xff] %vm40, %v109
  // Predicated region
  $region14: #{transformer_encoder.8} parent=0 // pred_check
    _
  $region15: #{transformer_encoder.8} parent=0 // pred_check_branch
    %120 = sbr.rel (0) target = $region17
  $region16: #{transformer_encoder.8} parent=0 // pred_region
    _
  $region17: #{transformer_encoder.8} parent=0 // pred_fallthru
    _
  // Predicated region
  $region18: #{transformer_encoder.8} parent=0 // pred_check
    _
  $region19: #{transformer_encoder.8} parent=0 // pred_check_branch
    %122 = sbr.rel (0) target = $region21
  $region20: #{transformer_encoder.8} parent=0 // pred_region
    _
  $region21: #{transformer_encoder.8} parent=0 // pred_fallthru
    _

// kernel: transformer_encoder.10
$region0: #{transformer_encoder.10}
  #allocation0 [shape = 'u32[]', space=smem, size = 0x4, offset = 0x4, fixed_abs, tag = 'smem constant byte address 0x4 - core index']
  #allocation1 [shape = 'u32[72,128]{1,0:T(1,128)}', space=vmem, size = 0x9000, scoped, tag = 'internal scratch']
  %s0 = inlined_call_operand.vmem [shape: f32[32,64], index: 0, kind: input, shape index: {}]
  %s1 = inlined_call_operand.vmem [shape: f32[64,64], index: 1, kind: input, shape index: {}]
  %s2 = inlined_call_operand.vmem [shape: f32[1,64], index: 2, kind: input, shape index: {}]
  %s3 = inlined_call_operand.vmem [shape: f32[32,64], index: 3, kind: input, shape index: {}]
  %s4 = inlined_call_operand.vmem [shape: f32[1,64], index: 4, kind: input, shape index: {}]
  %s5 = inlined_call_operand.vmem [shape: f32[1,64], index: 5, kind: input, shape index: {}]
  %s6 = inlined_call_operand.vmem [shape: f32[32,64], index: 6, kind: output, shape index: {}]
  %s7 = sld [smem:[#allocation0]]
  $region34: #{transformer_encoder.10} parent=0
    _
  %s9 = ssub.s32 1, %s7
  %s10 = scalar_select 0, %s9, %s7
  // Predicated region
  $region2: #{transformer_encoder.10} parent=0 // pred_check
    _
  $region3: #{transformer_encoder.10} parent=0 // pred_check_branch
    %12 = sbr.rel (0) target = $region5
  $region4: #{transformer_encoder.10} parent=0 // pred_region
    _
  $region5: #{transformer_encoder.10} parent=0 // pred_fallthru
    _
  // Predicated region
  $region6: #{transformer_encoder.10} parent=0 // pred_check
    _
  $region7: #{transformer_encoder.10} parent=0 // pred_check_branch
    %14 = sbr.rel (0) target = $region9
  $region8: #{transformer_encoder.10} parent=0 // pred_region
    _
  $region9: #{transformer_encoder.10} parent=0 // pred_fallthru
    _
  // Predicated region
  $region10: #{transformer_encoder.10} parent=0 // pred_check
    _
  $region11: #{transformer_encoder.10} parent=0 // pred_check_branch
    %16 = sbr.rel (0) target = $region13
  $region12: #{transformer_encoder.10} parent=0 // pred_region
    _
  $region13: #{transformer_encoder.10} parent=0 // pred_fallthru
    _
  // Predicated region
  $region14: #{transformer_encoder.10} parent=0 // pred_check
    _
  $region15: #{transformer_encoder.10} parent=0 // pred_check_branch
    %18 = sbr.rel (0) target = $region17
  $region16: #{transformer_encoder.10} parent=0 // pred_region
    _
  $region17: #{transformer_encoder.10} parent=0 // pred_fallthru
    _
  // Predicated region
  $region18: #{transformer_encoder.10} parent=0 // pred_check
    _
  $region19: #{transformer_encoder.10} parent=0 // pred_check_branch
    %20 = sbr.rel (0) target = $region21
  $region20: #{transformer_encoder.10} parent=0 // pred_region
    _
  $region21: #{transformer_encoder.10} parent=0 // pred_fallthru
    _
  // Predicated region
  $region22: #{transformer_encoder.10} parent=0 // pred_check
    _
  $region23: #{transformer_encoder.10} parent=0 // pred_check_branch
    %22 = sbr.rel (0) target = $region25
  $region24: #{transformer_encoder.10} parent=0 // pred_region
    _
  $region25: #{transformer_encoder.10} parent=0 // pred_fallthru
    _
  %v23 = vld [vmem:[%s0] sm:$0xff]
  %v24 = vld [vmem:[%s0 + $0x8] sm:$0xff]
  %v25 = vld [vmem:[%s0 + $0x10] sm:$0xff]
  %v26 = vld [vmem:[%s0 + $0x18] sm:$0xff]
  %v27 = vld [vmem:[%s1] sm:$0xff]
  %v28 = vld [vmem:[%s1 + $0x8] sm:$0xff]
  %v29 = vld [vmem:[%s1 + $0x10] sm:$0xff]
  %v30 = vld [vmem:[%s1 + $0x18] sm:$0xff]
  %v31 = vld [vmem:[%s1 + $0x20] sm:$0xff]
  %v32 = vld [vmem:[%s1 + $0x28] sm:$0xff]
  %v33 = vld [vmem:[%s1 + $0x30] sm:$0xff]
  %v34 = vld [vmem:[%s1 + $0x38] sm:$0xff]
  %v35 = vld [vmem:[%s2] sm:$0x1]
  %v37 = vperm.slane %v35, 0
  %vm39 = vcmask 523264
  %v41 = vsel %vm39, %v23, 0
  %v44 = vsel %vm39, %v24, 0
  %v47 = vsel %vm39, %v25, 0
  %v50 = vsel %vm39, %v26, 0
  %52 = vmatpush.msra.mxu0 0.0
  %53 = vmatpush.msra.mxu0 0.0
  %54 = vmatpush.msra.mxu0 0.0
  %55 = vmatpush.msra.mxu0 0.0
  %56 = vmatpush.msra.mxu0 0.0
  %57 = vmatpush.msra.mxu0 0.0
  %58 = vmatpush.msra.mxu0 0.0
  %59 = vmatpush.msra.mxu0 0.0
  %60 = vmatpush.msra.mxu0 %v34
  %61 = vmatpush.msra.mxu0 %v33
  %62 = vmatpush.msra.mxu0 %v32
  %63 = vmatpush.msra.mxu0 %v31
  %64 = vmatpush.msra.mxu0 %v30
  %65 = vmatpush.msra.mxu0 %v29
  %66 = vmatpush.msra.mxu0 %v28
  %67 = vmatpush.msra.mxu0 %v27
  %68 = vmatmul.f32.gmra.mxu0 %v41
  %v69 = vpop.f32.mrf.mxu0
  %v70 = vadd.f32 %v37, %v69
  %71 = vmatmul.f32.gmra.mxu0 %v44
  %v72 = vpop.f32.mrf.mxu0
  %v73 = vadd.f32 %v37, %v72
  %74 = vmatmul.f32.gmra.mxu0 %v47
  %v75 = vpop.f32.mrf.mxu0
  %v76 = vadd.f32 %v37, %v75
  %77 = vmatmul.f32.gmra.mxu0 %v50
  %v78 = vpop.f32.mrf.mxu0
  %v79 = vadd.f32 %v37, %v78
  %80 = vdwg.mxu0
  %v81 = vld [vmem:[%s3] sm:$0xff]
  %v82 = vld [vmem:[%s3 + $0x8] sm:$0xff]
  %v83 = vld [vmem:[%s3 + $0x10] sm:$0xff]
  %v84 = vld [vmem:[%s3 + $0x18] sm:$0xff]
  %v85 = vadd.f32 %v70, %v81
  %v86 = vadd.f32 %v73, %v82
  %v87 = vadd.f32 %v76, %v83
  %v88 = vadd.f32 %v79, %v84
  %v89 = vsel %vm39, %v85, 0.0
  %90 = vadd.xlane.f32.xlu0 %v89
  %v91 = vpop.xlane.xlu0 %90
  %v92 = vsel %vm39, %v86, 0.0
  %93 = vadd.xlane.f32.xlu0 %v92
  %v94 = vpop.xlane.xlu0 %93
  %v95 = vsel %vm39, %v87, 0.0
  %96 = vadd.xlane.f32.xlu0 %v95
  %v97 = vpop.xlane.xlu0 %96
  %v98 = vsel %vm39, %v88, 0.0
  %99 = vadd.xlane.f32.xlu0 %v98
  %v100 = vpop.xlane.xlu0 %99
  %v101 = vrcp.pop 64.0
  %v102 = vmul.f32 64.0, %v101
  %v103 = vsub.f32 1.0, %v102
  %v104 = vmul.f32 %v101, %v103
  %v105 = vadd.f32 %v101, %v104
  %vm106 = vweird.f32 %v101
  %v107 = vsel %vm106, %v101, %v105
  %v108 = vmul.f32 %v91, %v107
  %v109 = vmul.f32 %v94, %v107
  %v110 = vmul.f32 %v97, %v107
  %v111 = vmul.f32 %v100, %v107
  %v112 = vsub.f32 %v85, %v108
  %v113 = vsub.f32 %v86, %v109
  %v114 = vsub.f32 %v87, %v110
  %v115 = vsub.f32 %v88, %v111
  %v116 = vmul.f32 %v112, %v112
  %v117 = vmul.f32 %v113, %v113
  %v118 = vmul.f32 %v114, %v114
  %v119 = vmul.f32 %v115, %v115
  %v120 = vsel %vm39, %v116, 0.0
  %121 = vadd.xlane.f32.xlu0 %v120
  %v122 = vpop.xlane.xlu0 %121
  %v123 = vsel %vm39, %v117, 0.0
  %124 = vadd.xlane.f32.xlu0 %v123
  %v125 = vpop.xlane.xlu0 %124
  %v126 = vsel %vm39, %v118, 0.0
  %127 = vadd.xlane.f32.xlu0 %v126
  %v128 = vpop.xlane.xlu0 %127
  %v129 = vsel %vm39, %v119, 0.0
  %130 = vadd.xlane.f32.xlu0 %v129
  %v131 = vpop.xlane.xlu0 %130
  %v132 = vmul.f32 %v122, %v107
  %v133 = vmul.f32 %v125, %v107
  %v134 = vmul.f32 %v128, %v107
  %v135 = vmul.f32 %v131, %v107
  %v136 = vadd.f32 %v132, 1e-06
  %v137 = vadd.f32 %v133, 1e-06
  %v138 = vadd.f32 %v134, 1e-06
  %v139 = vadd.f32 %v135, 1e-06
  %v140 = vrsqrt.pop %v136
  %v141 = vmul.f32 %v140, %v136
  %v142 = vmul.f32 %v141, %v140
  %v143 = vmul.f32 0.5, %v142
  %v144 = vsub.f32 1.5, %v143
  %v145 = vmul.f32 %v140, %v144
  %vm146 = vweird.f32 %v136
  %vm147 = vweird.f32 %v140
  %vm148 = vmor %vm146, %vm147
  %v149 = vsel %vm148, %v140, %v145
  %v150 = vrsqrt.pop %v137
  %v151 = vmul.f32 %v150, %v137
  %v152 = vmul.f32 %v151, %v150
  %v153 = vmul.f32 0.5, %v152
  %v154 = vsub.f32 1.5, %v153
  %v155 = vmul.f32 %v150, %v154
  %vm156 = vweird.f32 %v137
  %vm157 = vweird.f32 %v150
  %vm158 = vmor %vm156, %vm157
  %v159 = vsel %vm158, %v150, %v155
  %v160 = vrsqrt.pop %v138
  %v161 = vmul.f32 %v160, %v138
  %v162 = vmul.f32 %v161, %v160
  %v163 = vmul.f32 0.5, %v162
  %v164 = vsub.f32 1.5, %v163
  %v165 = vmul.f32 %v160, %v164
  %vm166 = vweird.f32 %v138
  %vm167 = vweird.f32 %v160
  %vm168 = vmor %vm166, %vm167
  %v169 = vsel %vm168, %v160, %v165
  %v170 = vrsqrt.pop %v139
  %v171 = vmul.f32 %v170, %v139
  %v172 = vmul.f32 %v171, %v170
  %v173 = vmul.f32 0.5, %v172
  %v174 = vsub.f32 1.5, %v173
  %v175 = vmul.f32 %v170, %v174
  %vm176 = vweird.f32 %v139
  %vm177 = vweird.f32 %v170
  %vm178 = vmor %vm176, %vm177
  %v179 = vsel %vm178, %v170, %v175
  %v180 = vmul.f32 %v112, %v149
  %v181 = vmul.f32 %v113, %v159
  %v182 = vmul.f32 %v114, %v169
  %v183 = vmul.f32 %v115, %v179
  %v184 = vld [vmem:[%s4] sm:$0x1]
  %v186 = vperm.slane %v184, 0
  %v188 = vmul.f32 %v180, %v186
  %v189 = vmul.f32 %v181, %v186
  %v190 = vmul.f32 %v182, %v186
  %v191 = vmul.f32 %v183, %v186
  %v192 = vld [vmem:[%s5] sm:$0x1]
  %v194 = vperm.slane %v192, 0
  %v196 = vadd.f32 %v188, %v194
  %v197 = vadd.f32 %v189, %v194
  %v198 = vadd.f32 %v190, %v194
  %v199 = vadd.f32 %v191, %v194
  %200 = vst.msk [vmem:[%s6] sm:$0xff] %vm39, %v196
  %201 = vst.msk [vmem:[%s6 + $0x8] sm:$0xff] %vm39, %v197
  %202 = vst.msk [vmem:[%s6 + $0x10] sm:$0xff] %vm39, %v198
  %203 = vst.msk [vmem:[%s6 + $0x18] sm:$0xff] %vm39, %v199
  // Predicated region
  $region26: #{transformer_encoder.10} parent=0 // pred_check
    _
  $region27: #{transformer_encoder.10} parent=0 // pred_check_branch
    %205 = sbr.rel (0) target = $region29
  $region28: #{transformer_encoder.10} parent=0 // pred_region
    _
  $region29: #{transformer_encoder.10} parent=0 // pred_fallthru
    _
  // Predicated region
  $region30: #{transformer_encoder.10} parent=0 // pred_check
    _
  $region31: #{transformer_encoder.10} parent=0 // pred_check_branch
    %207 = sbr.rel (0) target = $region33
  $region32: #{transformer_encoder.10} parent=0 // pred_region
    _
  $region33: #{transformer_encoder.10} parent=0 // pred_fallthru
    _

// kernel: transformer_encoder.9
$region0: #{transformer_encoder.9}
  #allocation0 [shape = 'u32[]', space=smem, size = 0x4, offset = 0x4, fixed_abs, tag = 'smem constant byte address 0x4 - core index']
  #allocation1 [shape = 'u32[72,128]{1,0:T(1,128)}', space=vmem, size = 0x9000, scoped, tag = 'internal scratch']
  %s0 = inlined_call_operand.vmem [shape: f32[2,16,192], index: 0, kind: input, shape index: {}]
  %s1 = inlined_call_operand.vmem [shape: f32[2,1,16], index: 1, kind: input, shape index: {}]
  %s2 = inlined_call_operand.vmem [shape: f32[2,16,64], index: 2, kind: output, shape index: {}]
  %s3 = sld [smem:[#allocation0]]
  $region41: #{transformer_encoder.9} parent=0
    _
  %s5 = ssub.s32 1, %s3
  %s6 = scalar_select 0, %s5, %s3
  loop: start=0, step=1, limit=4
  $region2: #{transformer_encoder.9} parent=0 // loop_pre_header
    _
  $region3: #{transformer_encoder.9} parent=0 // loop_header
    %s8 = sphi 0, %s12
    %p9 = scmp.ge.s32.totalorder %s8, 4
    %s18 = sphi 0, %s20
    %s21 = sphi 0, %s18
    %s22 = sphi 0, %s21
    %s38 = sphi 0, %s22
    %s44 = sphi 0, %s46
    %s47 = sphi 0, %s44
    %s48 = sphi 0, %s47
    %s64 = sphi 0, %s48
    %s70 = sphi 0, %s72
    %s73 = sphi 0, %s70
    %s74 = sphi 0, %s73
    %s90 = sphi 0, %s74
  $region4: #{transformer_encoder.9} parent=0 // loop_header_branch
    %11 = sbr.rel (%p9) target = $region8
  $region5: #{transformer_encoder.9} parent=0 // loop_body
    %s13 = ssub.s32 %s8, 1
    %s14 = ssub.s32 %s8, 2
    %s15 = sadd.s32 %s8, 1
    %s16 = ssub.s32 %s8, %s15
    %p17 = scmp.eq.s32.totalorder %s16, 0
    %s19 = sadd.s32 %s18, 1
    %s20 = scalar_select %p17, %s18, %s19
    %p23 = pneg %p17
    %p24 = scmp.eq.s32.totalorder %s8, 1
    %p25 = por %p23, %p24
    %p26 = scmp.ne.s32.totalorder %s18, %s21
    %p27 = scmp.eq.s32.totalorder %s8, 0
    %p28 = por %p26, %p27
    %p29 = scmp.ne.s32.totalorder %s18, %s21
    %p30 = scmp.eq.s32.totalorder %s13, 1
    %p31 = por %p29, %p30
    %p32 = scmp.ne.s32.totalorder %s21, %s22
    %p33 = scmp.eq.s32.totalorder %s13, 0
    %p34 = por %p32, %p33
    %p35 = scmp.ne.s32.totalorder %s21, %s22
    %p36 = scmp.eq.s32.totalorder %s14, 1
    %p37 = por %p35, %p36
    %p39 = scmp.ne.s32.totalorder %s22, %s38
    %p40 = scmp.eq.s32.totalorder %s14, 0
    %p41 = por %p39, %p40
    %s42 = ssub.s32 %s8, %s15
    %p43 = scmp.eq.s32.totalorder %s42, 0
    %s45 = sadd.s32 %s44, 1
    %s46 = scalar_select %p43, %s44, %s45
    %p49 = pneg %p43
    %p50 = scmp.eq.s32.totalorder %s8, 1
    %p51 = por %p49, %p50
    %p52 = scmp.ne.s32.totalorder %s44, %s47
    %p53 = scmp.eq.s32.totalorder %s8, 0
    %p54 = por %p52, %p53
    %p55 = scmp.ne.s32.totalorder %s44, %s47
    %p56 = scmp.eq.s32.totalorder %s13, 1
    %p57 = por %p55, %p56
    %p58 = scmp.ne.s32.totalorder %s47, %s48
    %p59 = scmp.eq.s32.totalorder %s13, 0
    %p60 = por %p58, %p59
    %p61 = scmp.ne.s32.totalorder %s47, %s48
    %p62 = scmp.eq.s32.totalorder %s14, 1
    %p63 = por %p61, %p62
    %p65 = scmp.ne.s32.totalorder %s48, %s64
    %p66 = scmp.eq.s32.totalorder %s14, 0
    %p67 = por %p65, %p66
    %s68 = ssub.s32 %s8, %s15
    %p69 = scmp.eq.s32.totalorder %s68, 0
    %s71 = sadd.s32 %s70, 1
    %s72 = scalar_select %p69, %s70, %s71
    %p75 = pneg %p69
    %p76 = scmp.eq.s32.totalorder %s8, 1
    %p77 = por %p75, %p76
    %p78 = scmp.ne.s32.totalorder %s70, %s73
    %p79 = scmp.eq.s32.totalorder %s8, 0
    %p80 = por %p78, %p79
    %p81 = scmp.ne.s32.totalorder %s70, %s73
    %p82 = scmp.eq.s32.totalorder %s13, 1
    %p83 = por %p81, %p82
    %p84 = scmp.ne.s32.totalorder %s73, %s74
    %p85 = scmp.eq.s32.totalorder %s13, 0
    %p86 = por %p84, %p85
    %p87 = scmp.ne.s32.totalorder %s73, %s74
    %p88 = scmp.eq.s32.totalorder %s14, 1
    %p89 = por %p87, %p88
    %p91 = scmp.ne.s32.totalorder %s74, %s90
    %p92 = scmp.eq.s32.totalorder %s14, 0
    %p93 = por %p91, %p92
    %p94 = scmp.le.s32.totalorder 1, %s8
    %p95 = scmp.lt.s32.totalorder %s8, 3
    %p96 = pnand %p94, %p95
    %p97 = pneg %p96
    // Predicated region
    $region9: #{transformer_encoder.9} parent=5 // pred_check
      _
    $region10: #{transformer_encoder.9} parent=5 // pred_check_branch
      %99 = sbr.rel (%p96) target = $region12
    $region11: #{transformer_encoder.9} parent=5 // pred_region
      %s100 = ssub.s32 %s8, 1
    $region12: #{transformer_encoder.9} parent=5 // pred_fallthru
      _
    %p101 = scmp.lt.s32.totalorder %s8, 2
    // Predicated region
    $region13: #{transformer_encoder.9} parent=5 // pred_check
      %p102 = pneg %p101
    $region14: #{transformer_encoder.9} parent=5 // pred_check_branch
      %104 = sbr.rel (%p102) target = $region16
    $region15: #{transformer_encoder.9} parent=5 // pred_region
      // Predicated region
      $region17: #{transformer_encoder.9} parent=15 // pred_check
        %p105 = pneg %p28
      $region18: #{transformer_encoder.9} parent=15 // pred_check_branch
        %107 = sbr.rel (%p105) target = $region20
      $region19: #{transformer_encoder.9} parent=15 // pred_region
        %p108 = scmp.lt.s32.totalorder %s8, 1
        %s109 = scalar_select %p108, %s8, 1
        %s110 = smul.addr %s109, 4
        %s111 = smul.addr %s110, 8
        %s112 = scalar_lea.vmem %s0, %s111
      $region20: #{transformer_encoder.9} parent=15 // pred_fallthru
        _
      // Predicated region
      $region21: #{transformer_encoder.9} parent=15 // pred_check
        %p113 = pneg %p54
      $region22: #{transformer_encoder.9} parent=15 // pred_check_branch
        %115 = sbr.rel (%p113) target = $region24
      $region23: #{transformer_encoder.9} parent=15 // pred_region
        %p116 = scmp.lt.s32.totalorder %s8, 1
        %s117 = scalar_select %p116, %s8, 1
        %s118 = scalar_lea.vmem %s1, %s117
      $region24: #{transformer_encoder.9} parent=15 // pred_fallthru
        _
    $region16: #{transformer_encoder.9} parent=5 // pred_fallthru
      _
    %p119 = scmp.le.s32.totalorder 1, %s8
    %p120 = scmp.lt.s32.totalorder %s8, 3
    %p121 = pnand %p119, %p120
    %p122 = pneg %p121
    // Predicated region
    $region25: #{transformer_encoder.9} parent=5 // pred_check
      _
    $region26: #{transformer_encoder.9} parent=5 // pred_check_branch
      %124 = sbr.rel (%p121) target = $region28
    $region27: #{transformer_encoder.9} parent=5 // pred_region
      %s125 = ssub.s32 %s8, 1
      %p126 = scmp.lt.s32.totalorder %s13, 1
      %s127 = scalar_select %p126, %s13, 1
      %s128 = smul.addr %s127, 4
      %s129 = smul.addr %s128, 8
      %s130 = scalar_lea.vmem %s0, %s129
      %p131 = pneg %p34
      %p132 = pneg %p31
      %p133 = scmp.lt.s32.totalorder %s13, 1
      %s134 = scalar_select %p133, %s13, 1
      %s135 = scalar_lea.vmem %s1, %s134
      %p136 = pneg %p60
      %p137 = pneg %p57
      %p138 = pneg %p86
      %p139 = pneg %p83
      %p140 = scmp.lt.s32.totalorder %s13, 1
      %s141 = scalar_select %p140, %s13, 1
      %s142 = smul.addr %s141, 2
      %s143 = smul.addr %s142, 8
      %s144 = scalar_lea.vmem %s2, %s143
      %p145 = scmp.lt.s32.totalorder %s13, 1
      %s146 = scalar_select %p145, %s13, 1
      %s147 = smul.addr %s146, 4
      %s148 = smul.addr %s147, 8
      %s149 = scalar_lea.vmem %s0, %s148
      %p150 = scmp.lt.s32.totalorder %s13, 1
      %s151 = scalar_select %p150, %s13, 1
      %s152 = scalar_lea.vmem %s1, %s151
      %p153 = scmp.lt.s32.totalorder %s13, 1
      %s154 = scalar_select %p153, %s13, 1
      %s155 = smul.addr %s154, 2
      %s156 = smul.addr %s155, 8
      %s157 = scalar_lea.vmem %s2, %s156
      %v158 = vld [vmem:[%s149] sm:$0xff]
      %v159 = vld [vmem:[%s149 + $0x8] sm:$0xff]
      %v160 = vld [vmem:[%s149 + $0x10] sm:$0xff]
      %v161 = vld [vmem:[%s149 + $0x18] sm:$0xff]
      %v162 = vld [vmem:[%s152] sm:$0x1]
      %165 = vrot.lane.b32.xlu0 %v158, 64
      %v166 = vpop.permute.xlu0 %165
      %167 = vrot.lane.b32.xlu0 %v160, 64
      %v168 = vpop.permute.xlu0 %167
      %vm169 = vcmask 130048
      %v170 = vsel %vm169, %v158, 0
      %v172 = vsel %vm169, %v160, 0
      %v174 = vsel %vm169, %v166, 0
      %v176 = vsel %vm169, %v168, 0
      %178 = vmatpush.xpose.msra.mxu0 0.0
      %179 = vmatpush.xpose.msra.mxu0 0.0
      %180 = vmatpush.xpose.msra.mxu0 0.0
      %181 = vmatpush.xpose.msra.mxu0 0.0
      %182 = vmatpush.xpose.msra.mxu0 0.0
      %183 = vmatpush.xpose.msra.mxu0 0.0
      %184 = vmatpush.xpose.msra.mxu0 0.0
      %185 = vmatpush.xpose.msra.mxu0 0.0
      %186 = vmatpush.xpose.msra.mxu0 0.0
      %187 = vmatpush.xpose.msra.mxu0 0.0
      %188 = vmatpush.xpose.msra.mxu0 0.0
      %189 = vmatpush.xpose.msra.mxu0 0.0
      %190 = vmatpush.xpose.msra.mxu0 0.0
      %191 = vmatpush.xpose.msra.mxu0 0.0
      %192 = vmatpush.xpose.msra.mxu0 %v176
      %193 = vmatpush.xpose.msra.mxu0 %v174
      %194 = vmatmul.f32.gmra.mxu0 %v170
      %v195 = vpop.f32.mrf.mxu0
      %v196 = vadd.f32 0.0, %v195
      %197 = vmatmul.f32.gmra.mxu0 %v172
      %v198 = vpop.f32.mrf.mxu0
      %v199 = vadd.f32 0.0, %v198
      %200 = vdwg.mxu0
      %v201 = vmul.f32 %v196, 0.25
      %v202 = vmul.f32 %v199, 0.25
      %vm203 = vcmp.gt.f32.partialorder %v162, 0.5
      %v204 = vsel %vm203, 1, 0
      %v205 = vperm.slane %v204, 0
      %vm206 = vcmp.eq.s32.totalorder %v205, 1
      %v207 = vsel %vm206, -1e+09, %v201
      %v208 = vsel %vm206, -1e+09, %v202
      %v209 = vsel %vm169, %v207, -inf
      %210 = vmax.xlane.f32.xlu0 %v209
      %v211 = vpop.xlane.xlu0 %210
      %v212 = vsel %vm169, %v208, -inf
      %213 = vmax.xlane.f32.xlu0 %v212
      %v214 = vpop.xlane.xlu0 %213
      %v215 = vsub.f32 %v207, %v211
      %v216 = vsub.f32 %v208, %v214
      %v217 = vmul.f32 %v215, 1.442695
      %v218 = vpow.pop %v217
      %v219 = vmul.f32 %v216, 1.442695
      %v220 = vpow.pop %v219
      %v221 = vsel %vm169, %v218, 0.0
      %222 = vadd.xlane.f32.xlu0 %v221
      %v223 = vpop.xlane.xlu0 %222
      %v224 = vsel %vm169, %v220, 0.0
      %225 = vadd.xlane.f32.xlu0 %v224
      %v226 = vpop.xlane.xlu0 %225
      %v227 = vrcp.pop %v223
      %v228 = vmul.f32 %v223, %v227
      %v229 = vsub.f32 1.0, %v228
      %v230 = vmul.f32 %v227, %v229
      %v231 = vadd.f32 %v227, %v230
      %vm232 = vweird.f32 %v223
      %vm233 = vweird.f32 %v227
      %vm234 = vmor %vm232, %vm233
      %v235 = vsel %vm234, %v227, %v231
      %v236 = vand.u32 2147483647, %v223
      %vm237 = vcmp.eq.f32.partialorder %v236, 8.507059e+37
      %v238 = vand.u32 %v223, 2147483648
      %v239 = vor.u32 1.1754944e-38, %v238
      %v240 = vsel %vm237, %v239, %v235
      %v241 = vrcp.pop %v226
      %v242 = vmul.f32 %v226, %v241
      %v243 = vsub.f32 1.0, %v242
      %v244 = vmul.f32 %v241, %v243
      %v245 = vadd.f32 %v241, %v244
      %vm246 = vweird.f32 %v226
      %vm247 = vweird.f32 %v241
      %vm248 = vmor %vm246, %vm247
      %v249 = vsel %vm248, %v241, %v245
      %v250 = vand.u32 2147483647, %v226
      %vm251 = vcmp.eq.f32.partialorder %v250, 8.507059e+37
      %v252 = vand.u32 %v226, 2147483648
      %v253 = vor.u32 1.1754944e-38, %v252
      %v254 = vsel %vm251, %v253, %v249
      %v255 = vmul.f32 %v218, %v240
      %v256 = vmul.f32 %v220, %v254
      %v258 = vsel %vm169, %v255, 0
      %v261 = vsel %vm169, %v256, 0
      %263 = vmatpush.msra.mxu0 0.0
      %264 = vmatpush.msra.mxu0 0.0
      %265 = vmatpush.msra.mxu0 0.0
      %266 = vmatpush.msra.mxu0 0.0
      %267 = vmatpush.msra.mxu0 0.0
      %268 = vmatpush.msra.mxu0 0.0
      %269 = vmatpush.msra.mxu0 0.0
      %270 = vmatpush.msra.mxu0 0.0
      %271 = vmatpush.msra.mxu0 0.0
      %272 = vmatpush.msra.mxu0 0.0
      %273 = vmatpush.msra.mxu0 0.0
      %274 = vmatpush.msra.mxu0 0.0
      %275 = vmatpush.msra.mxu0 0.0
      %276 = vmatpush.msra.mxu0 0.0
      %277 = vmatpush.msra.mxu0 %v161
      %278 = vmatpush.msra.mxu0 %v159
      %279 = vmatmul.f32.gmra.mxu0 %v258
      %v280 = vpop.f32.mrf.mxu0
      %v281 = vadd.f32 0.0, %v280
      %282 = vmatmul.f32.gmra.mxu0 %v261
      %v283 = vpop.f32.mrf.mxu0
      %v284 = vadd.f32 0.0, %v283
      %285 = vdwg.mxu0
      %286 = vrot.lane.b32.xlu0 %v158, 112
      %v287 = vpop.permute.xlu0 %286
      %288 = vrot.lane.b32.xlu0 %v160, 112
      %v289 = vpop.permute.xlu0 %288
      %290 = vrot.lane.b32.xlu0 %v158, 48
      %v291 = vpop.permute.xlu0 %290
      %292 = vrot.lane.b32.xlu0 %v160, 48
      %v293 = vpop.permute.xlu0 %292
      %v294 = vsel %vm169, %v287, 0
      %v296 = vsel %vm169, %v289, 0
      %v298 = vsel %vm169, %v291, 0
      %v300 = vsel %vm169, %v293, 0
      %302 = vmatpush.xpose.msra.mxu0 0.0
      %303 = vmatpush.xpose.msra.mxu0 0.0
      %304 = vmatpush.xpose.msra.mxu0 0.0
      %305 = vmatpush.xpose.msra.mxu0 0.0
      %306 = vmatpush.xpose.msra.mxu0 0.0
      %307 = vmatpush.xpose.msra.mxu0 0.0
      %308 = vmatpush.xpose.msra.mxu0 0.0
      %309 = vmatpush.xpose.msra.mxu0 0.0
      %310 = vmatpush.xpose.msra.mxu0 0.0
      %311 = vmatpush.xpose.msra.mxu0 0.0
      %312 = vmatpush.xpose.msra.mxu0 0.0
      %313 = vmatpush.xpose.msra.mxu0 0.0
      %314 = vmatpush.xpose.msra.mxu0 0.0
      %315 = vmatpush.xpose.msra.mxu0 0.0
      %316 = vmatpush.xpose.msra.mxu0 %v300
      %317 = vmatpush.xpose.msra.mxu0 %v298
      %318 = vmatmul.f32.gmra.mxu0 %v294
      %v319 = vpop.f32.mrf.mxu0
      %v320 = vadd.f32 0.0, %v319
      %321 = vmatmul.f32.gmra.mxu0 %v296
      %v322 = vpop.f32.mrf.mxu0
      %v323 = vadd.f32 0.0, %v322
      %324 = vdwg.mxu0
      %v325 = vmul.f32 %v320, 0.25
      %v326 = vmul.f32 %v323, 0.25
      %v327 = vsel %vm206, -1e+09, %v325
      %v328 = vsel %vm206, -1e+09, %v326
      %v329 = vsel %vm169, %v327, -inf
      %330 = vmax.xlane.f32.xlu0 %v329
      %v331 = vpop.xlane.xlu0 %330
      %v332 = vsel %vm169, %v328, -inf
      %333 = vmax.xlane.f32.xlu0 %v332
      %v334 = vpop.xlane.xlu0 %333
      %v335 = vsub.f32 %v327, %v331
      %v336 = vsub.f32 %v328, %v334
      %v337 = vmul.f32 %v335, 1.442695
      %v338 = vpow.pop %v337
      %v339 = vmul.f32 %v336, 1.442695
      %v340 = vpow.pop %v339
      %v341 = vsel %vm169, %v338, 0.0
      %342 = vadd.xlane.f32.xlu0 %v341
      %v343 = vpop.xlane.xlu0 %342
      %v344 = vsel %vm169, %v340, 0.0
      %345 = vadd.xlane.f32.xlu0 %v344
      %v346 = vpop.xlane.xlu0 %345
      %v347 = vrcp.pop %v343
      %v348 = vmul.f32 %v343, %v347
      %v349 = vsub.f32 1.0, %v348
      %v350 = vmul.f32 %v347, %v349
      %v351 = vadd.f32 %v347, %v350
      %vm352 = vweird.f32 %v343
      %vm353 = vweird.f32 %v347
      %vm354 = vmor %vm352, %vm353
      %v355 = vsel %vm354, %v347, %v351
      %v356 = vand.u32 2147483647, %v343
      %vm357 = vcmp.eq.f32.partialorder %v356, 8.507059e+37
      %v358 = vand.u32 %v343, 2147483648
      %v359 = vor.u32 1.1754944e-38, %v358
      %v360 = vsel %vm357, %v359, %v355
      %v361 = vrcp.pop %v346
      %v362 = vmul.f32 %v346, %v361
      %v363 = vsub.f32 1.0, %v362
      %v364 = vmul.f32 %v361, %v363
      %v365 = vadd.f32 %v361, %v364
      %vm366 = vweird.f32 %v346
      %vm367 = vweird.f32 %v361
      %vm368 = vmor %vm366, %vm367
      %v369 = vsel %vm368, %v361, %v365
      %v370 = vand.u32 2147483647, %v346
      %vm371 = vcmp.eq.f32.partialorder %v370, 8.507059e+37
      %v372 = vand.u32 %v346, 2147483648
      %v373 = vor.u32 1.1754944e-38, %v372
      %v374 = vsel %vm371, %v373, %v369
      %v375 = vmul.f32 %v338, %v360
      %v376 = vmul.f32 %v340, %v374
      %379 = vrot.lane.b32.xlu0 %v159, 112
      %v380 = vpop.permute.xlu0 %379
      %381 = vrot.lane.b32.xlu0 %v161, 112
      %v382 = vpop.permute.xlu0 %381
      %v386 = vsel %vm169, %v375, 0
      %v389 = vsel %vm169, %v376, 0
      %391 = vmatpush.msra.mxu0 0.0
      %392 = vmatpush.msra.mxu0 0.0
      %393 = vmatpush.msra.mxu0 0.0
      %394 = vmatpush.msra.mxu0 0.0
      %395 = vmatpush.msra.mxu0 0.0
      %396 = vmatpush.msra.mxu0 0.0
      %397 = vmatpush.msra.mxu0 0.0
      %398 = vmatpush.msra.mxu0 0.0
      %399 = vmatpush.msra.mxu0 0.0
      %400 = vmatpush.msra.mxu0 0.0
      %401 = vmatpush.msra.mxu0 0.0
      %402 = vmatpush.msra.mxu0 0.0
      %403 = vmatpush.msra.mxu0 0.0
      %404 = vmatpush.msra.mxu0 0.0
      %405 = vmatpush.msra.mxu0 %v382
      %406 = vmatpush.msra.mxu0 %v380
      %407 = vmatmul.f32.gmra.mxu0 %v386
      %v408 = vpop.f32.mrf.mxu0
      %v409 = vadd.f32 0.0, %v408
      %410 = vmatmul.f32.gmra.mxu0 %v389
      %v411 = vpop.f32.mrf.mxu0
      %v412 = vadd.f32 0.0, %v411
      %413 = vdwg.mxu0
      %414 = vrot.lane.b32.xlu0 %v158, 96
      %v415 = vpop.permute.xlu0 %414
      %416 = vrot.lane.b32.xlu0 %v160, 96
      %v417 = vpop.permute.xlu0 %416
      %418 = vrot.lane.b32.xlu0 %v158, 32
      %v419 = vpop.permute.xlu0 %418
      %420 = vrot.lane.b32.xlu0 %v160, 32
      %v421 = vpop.permute.xlu0 %420
      %v422 = vsel %vm169, %v415, 0
      %v424 = vsel %vm169, %v417, 0
      %v426 = vsel %vm169, %v419, 0
      %v428 = vsel %vm169, %v421, 0
      %430 = vmatpush.xpose.msra.mxu0 0.0
      %431 = vmatpush.xpose.msra.mxu0 0.0
      %432 = vmatpush.xpose.msra.mxu0 0.0
      %433 = vmatpush.xpose.msra.mxu0 0.0
      %434 = vmatpush.xpose.msra.mxu0 0.0
      %435 = vmatpush.xpose.msra.mxu0 0.0
      %436 = vmatpush.xpose.msra.mxu0 0.0
      %437 = vmatpush.xpose.msra.mxu0 0.0
      %438 = vmatpush.xpose.msra.mxu0 0.0
      %439 = vmatpush.xpose.msra.mxu0 0.0
      %440 = vmatpush.xpose.msra.mxu0 0.0
      %441 = vmatpush.xpose.msra.mxu0 0.0
      %442 = vmatpush.xpose.msra.mxu0 0.0
      %443 = vmatpush.xpose.msra.mxu0 0.0
      %444 = vmatpush.xpose.msra.mxu0 %v428
      %445 = vmatpush.xpose.msra.mxu0 %v426
      %446 = vmatmul.f32.gmra.mxu0 %v422
      %v447 = vpop.f32.mrf.mxu0
      %v448 = vadd.f32 0.0, %v447
      %449 = vmatmul.f32.gmra.mxu0 %v424
      %v450 = vpop.f32.mrf.mxu0
      %v451 = vadd.f32 0.0, %v450
      %452 = vdwg.mxu0
      %v453 = vmul.f32 %v448, 0.25
      %v454 = vmul.f32 %v451, 0.25
      %v455 = vsel %vm206, -1e+09, %v453
      %v456 = vsel %vm206, -1e+09, %v454
      %v457 = vsel %vm169, %v455, -inf
      %458 = vmax.xlane.f32.xlu0 %v457
      %v459 = vpop.xlane.xlu0 %458
      %v460 = vsel %vm169, %v456, -inf
      %461 = vmax.xlane.f32.xlu0 %v460
      %v462 = vpop.xlane.xlu0 %461
      %v463 = vsub.f32 %v455, %v459
      %v464 = vsub.f32 %v456, %v462
      %v465 = vmul.f32 %v463, 1.442695
      %v466 = vpow.pop %v465
      %v467 = vmul.f32 %v464, 1.442695
      %v468 = vpow.pop %v467
      %v469 = vsel %vm169, %v466, 0.0
      %470 = vadd.xlane.f32.xlu0 %v469
      %v471 = vpop.xlane.xlu0 %470
      %v472 = vsel %vm169, %v468, 0.0
      %473 = vadd.xlane.f32.xlu0 %v472
      %v474 = vpop.xlane.xlu0 %473
      %v475 = vrcp.pop %v471
      %v476 = vmul.f32 %v471, %v475
      %v477 = vsub.f32 1.0, %v476
      %v478 = vmul.f32 %v475, %v477
      %v479 = vadd.f32 %v475, %v478
      %vm480 = vweird.f32 %v471
      %vm481 = vweird.f32 %v475
      %vm482 = vmor %vm480, %vm481
      %v483 = vsel %vm482, %v475, %v479
      %v484 = vand.u32 2147483647, %v471
      %vm485 = vcmp.eq.f32.partialorder %v484, 8.507059e+37
      %v486 = vand.u32 %v471, 2147483648
      %v487 = vor.u32 1.1754944e-38, %v486
      %v488 = vsel %vm485, %v487, %v483
      %v489 = vrcp.pop %v474
      %v490 = vmul.f32 %v474, %v489
      %v491 = vsub.f32 1.0, %v490
      %v492 = vmul.f32 %v489, %v491
      %v493 = vadd.f32 %v489, %v492
      %vm494 = vweird.f32 %v474
      %vm495 = vweird.f32 %v489
      %vm496 = vmor %vm494, %vm495
      %v497 = vsel %vm496, %v489, %v493
      %v498 = vand.u32 2147483647, %v474
      %vm499 = vcmp.eq.f32.partialorder %v498, 8.507059e+37
      %v500 = vand.u32 %v474, 2147483648
      %v501 = vor.u32 1.1754944e-38, %v500
      %v502 = vsel %vm499, %v501, %v497
      %v503 = vmul.f32 %v466, %v488
      %v504 = vmul.f32 %v468, %v502
      %505 = vrot.lane.b32.xlu0 %v159, 96
      %v506 = vpop.permute.xlu0 %505
      %507 = vrot.lane.b32.xlu0 %v161, 96
      %v508 = vpop.permute.xlu0 %507
      %v512 = vsel %vm169, %v503, 0
      %v515 = vsel %vm169, %v504, 0
      %517 = vmatpush.msra.mxu0 0.0
      %518 = vmatpush.msra.mxu0 0.0
      %519 = vmatpush.msra.mxu0 0.0
      %520 = vmatpush.msra.mxu0 0.0
      %521 = vmatpush.msra.mxu0 0.0
      %522 = vmatpush.msra.mxu0 0.0
      %523 = vmatpush.msra.mxu0 0.0
      %524 = vmatpush.msra.mxu0 0.0
      %525 = vmatpush.msra.mxu0 0.0
      %526 = vmatpush.msra.mxu0 0.0
      %527 = vmatpush.msra.mxu0 0.0
      %528 = vmatpush.msra.mxu0 0.0
      %529 = vmatpush.msra.mxu0 0.0
      %530 = vmatpush.msra.mxu0 0.0
      %531 = vmatpush.msra.mxu0 %v508
      %532 = vmatpush.msra.mxu0 %v506
      %533 = vmatmul.f32.gmra.mxu0 %v512
      %v534 = vpop.f32.mrf.mxu0
      %v535 = vadd.f32 0.0, %v534
      %536 = vmatmul.f32.gmra.mxu0 %v515
      %v537 = vpop.f32.mrf.mxu0
      %v538 = vadd.f32 0.0, %v537
      %539 = vdwg.mxu0
      %540 = vrot.lane.b32.xlu0 %v158, 80
      %v541 = vpop.permute.xlu0 %540
      %542 = vrot.lane.b32.xlu0 %v160, 80
      %v543 = vpop.permute.xlu0 %542
      %544 = vrot.lane.b32.xlu0 %v158, 16
      %v545 = vpop.permute.xlu0 %544
      %546 = vrot.lane.b32.xlu0 %v160, 16
      %v547 = vpop.permute.xlu0 %546
      %v548 = vsel %vm169, %v541, 0
      %v550 = vsel %vm169, %v543, 0
      %v552 = vsel %vm169, %v545, 0
      %v554 = vsel %vm169, %v547, 0
      %556 = vmatpush.xpose.msra.mxu0 0.0
      %557 = vmatpush.xpose.msra.mxu0 0.0
      %558 = vmatpush.xpose.msra.mxu0 0.0
      %559 = vmatpush.xpose.msra.mxu0 0.0
      %560 = vmatpush.xpose.msra.mxu0 0.0
      %561 = vmatpush.xpose.msra.mxu0 0.0
      %562 = vmatpush.xpose.msra.mxu0 0.0
      %563 = vmatpush.xpose.msra.mxu0 0.0
      %564 = vmatpush.xpose.msra.mxu0 0.0
      %565 = vmatpush.xpose.msra.mxu0 0.0
      %566 = vmatpush.xpose.msra.mxu0 0.0
      %567 = vmatpush.xpose.msra.mxu0 0.0
      %568 = vmatpush.xpose.msra.mxu0 0.0
      %569 = vmatpush.xpose.msra.mxu0 0.0
      %570 = vmatpush.xpose.msra.mxu0 %v554
      %571 = vmatpush.xpose.msra.mxu0 %v552
      %572 = vmatmul.f32.gmra.mxu0 %v548
      %v573 = vpop.f32.mrf.mxu0
      %v574 = vadd.f32 0.0, %v573
      %575 = vmatmul.f32.gmra.mxu0 %v550
      %v576 = vpop.f32.mrf.mxu0
      %v577 = vadd.f32 0.0, %v576
      %578 = vdwg.mxu0
      %v579 = vmul.f32 %v574, 0.25
      %v580 = vmul.f32 %v577, 0.25
      %v581 = vsel %vm206, -1e+09, %v579
      %v582 = vsel %vm206, -1e+09, %v580
      %v583 = vsel %vm169, %v581, -inf
      %584 = vmax.xlane.f32.xlu0 %v583
      %v585 = vpop.xlane.xlu0 %584
      %v586 = vsel %vm169, %v582, -inf
      %587 = vmax.xlane.f32.xlu0 %v586
      %v588 = vpop.xlane.xlu0 %587
      %v589 = vsub.f32 %v581, %v585
      %v590 = vsub.f32 %v582, %v588
      %v591 = vmul.f32 %v589, 1.442695
      %v592 = vpow.pop %v591
      %v593 = vmul.f32 %v590, 1.442695
      %v594 = vpow.pop %v593
      %v595 = vsel %vm169, %v592, 0.0
      %596 = vadd.xlane.f32.xlu0 %v595
      %v597 = vpop.xlane.xlu0 %596
      %v598 = vsel %vm169, %v594, 0.0
      %599 = vadd.xlane.f32.xlu0 %v598
      %v600 = vpop.xlane.xlu0 %599
      %v601 = vrcp.pop %v597
      %v602 = vmul.f32 %v597, %v601
      %v603 = vsub.f32 1.0, %v602
      %v604 = vmul.f32 %v601, %v603
      %v605 = vadd.f32 %v601, %v604
      %vm606 = vweird.f32 %v597
      %vm607 = vweird.f32 %v601
      %vm608 = vmor %vm606, %vm607
      %v609 = vsel %vm608, %v601, %v605
      %v610 = vand.u32 2147483647, %v597
      %vm611 = vcmp.eq.f32.partialorder %v610, 8.507059e+37
      %v612 = vand.u32 %v597, 2147483648
      %v613 = vor.u32 1.1754944e-38, %v612
      %v614 = vsel %vm611, %v613, %v609
      %v615 = vrcp.pop %v600
      %v616 = vmul.f32 %v600, %v615
      %v617 = vsub.f32 1.0, %v616
      %v618 = vmul.f32 %v615, %v617
      %v619 = vadd.f32 %v615, %v618
      %vm620 = vweird.f32 %v600
      %vm621 = vweird.f32 %v615
      %vm622 = vmor %vm620, %vm621
      %v623 = vsel %vm622, %v615, %v619
      %v624 = vand.u32 2147483647, %v600
      %vm625 = vcmp.eq.f32.partialorder %v624, 8.507059e+37
      %v626 = vand.u32 %v600, 2147483648
      %v627 = vor.u32 1.1754944e-38, %v626
      %v628 = vsel %vm625, %v627, %v623
      %v629 = vmul.f32 %v592, %v614
      %v630 = vmul.f32 %v594, %v628
      %631 = vrot.lane.b32.xlu0 %v159, 80
      %v632 = vpop.permute.xlu0 %631
      %633 = vrot.lane.b32.xlu0 %v161, 80
      %v634 = vpop.permute.xlu0 %633
      %v638 = vsel %vm169, %v629, 0
      %v641 = vsel %vm169, %v630, 0
      %643 = vmatpush.msra.mxu0 0.0
      %644 = vmatpush.msra.mxu0 0.0
      %645 = vmatpush.msra.mxu0 0.0
      %646 = vmatpush.msra.mxu0 0.0
      %647 = vmatpush.msra.mxu0 0.0
      %648 = vmatpush.msra.mxu0 0.0
      %649 = vmatpush.msra.mxu0 0.0
      %650 = vmatpush.msra.mxu0 0.0
      %651 = vmatpush.msra.mxu0 0.0
      %652 = vmatpush.msra.mxu0 0.0
      %653 = vmatpush.msra.mxu0 0.0
      %654 = vmatpush.msra.mxu0 0.0
      %655 = vmatpush.msra.mxu0 0.0
      %656 = vmatpush.msra.mxu0 0.0
      %657 = vmatpush.msra.mxu0 %v634
      %658 = vmatpush.msra.mxu0 %v632
      %659 = vmatmul.f32.gmra.mxu0 %v638
      %v660 = vpop.f32.mrf.mxu0
      %v661 = vadd.f32 0.0, %v660
      %662 = vmatmul.f32.gmra.mxu0 %v641
      %v663 = vpop.f32.mrf.mxu0
      %v664 = vadd.f32 0.0, %v663
      %665 = vdwg.mxu0
      %668 = vrot.lane.b32.xlu0 %v409, 16
      %v669 = vpop.permute.xlu0 %668
      %670 = vrot.lane.b32.xlu0 %v412, 16
      %v671 = vpop.permute.xlu0 %670
      %676 = vrot.lane.b32.xlu0 %v535, 32
      %v677 = vpop.permute.xlu0 %676
      %678 = vrot.lane.b32.xlu0 %v538, 32
      %v679 = vpop.permute.xlu0 %678
      %684 = vrot.lane.b32.xlu0 %v661, 48
      %v685 = vpop.permute.xlu0 %684
      %686 = vrot.lane.b32.xlu0 %v664, 48
      %v687 = vpop.permute.xlu0 %686
      %v690 = vsel %vm169, %v281, %v669
      %v691 = vsel %vm169, %v284, %v671
      %vm692 = vcmask 261120
      %v693 = vsel %vm692, %v690, %v677
      %v694 = vsel %vm692, %v691, %v679
      %vm695 = vcmask 392192
      %v696 = vsel %vm695, %v693, %v685
      %v697 = vsel %vm695, %v694, %v687
      %vm698 = vcmask 523264
      %699 = vst.msk [vmem:[%s157] sm:$0xff] %vm698, %v696
      %700 = vst.msk [vmem:[%s157 + $0x8] sm:$0xff] %vm698, %v697
      %p701 = scmp.lt.s32.totalorder %s13, 1
      %s702 = scalar_select %p701, %s13, 1
      %s703 = smul.addr %s702, 2
      %s704 = smul.addr %s703, 8
      %s705 = scalar_lea.vmem %s2, %s704
      // Predicated region
      $region29: #{transformer_encoder.9} parent=27 // pred_check
        %p706 = pneg %p83
      $region30: #{transformer_encoder.9} parent=27 // pred_check_branch
        %708 = sbr.rel (%p706) target = $region32
      $region31: #{transformer_encoder.9} parent=27 // pred_region
        _
      $region32: #{transformer_encoder.9} parent=27 // pred_fallthru
        _
    $region28: #{transformer_encoder.9} parent=5 // pred_fallthru
      _
    %p709 = scmp.le.s32.totalorder 2, %s8
    // Predicated region
    $region33: #{transformer_encoder.9} parent=5 // pred_check
      %p710 = pneg %p709
    $region34: #{transformer_encoder.9} parent=5 // pred_check_branch
      %712 = sbr.rel (%p710) target = $region36
    $region35: #{transformer_encoder.9} parent=5 // pred_region
      %s713 = ssub.s32 %s8, 2
      // Predicated region
      $region37: #{transformer_encoder.9} parent=35 // pred_check
        %p714 = pneg %p89
      $region38: #{transformer_encoder.9} parent=35 // pred_check_branch
        %716 = sbr.rel (%p714) target = $region40
      $region39: #{transformer_encoder.9} parent=35 // pred_region
        %p717 = scmp.lt.s32.totalorder %s14, 1
        %s718 = scalar_select %p717, %s14, 1
        %s719 = smul.addr %s718, 2
        %s720 = smul.addr %s719, 8
        %s721 = scalar_lea.vmem %s2, %s720
      $region40: #{transformer_encoder.9} parent=35 // pred_fallthru
        _
    $region36: #{transformer_encoder.9} parent=5 // pred_fallthru
      _
  $region6: #{transformer_encoder.9} parent=0 // loop_footer
    %s12 = sadd.s32 1, %s8
  $region7: #{transformer_encoder.9} parent=0 // loop_footer_branch
    %7 = sbr.rel target = $region3
  $region8: #{transformer_encoder.9} parent=0 // loop_exit
    _

// kernel: transformer_encoder.11
$region0: #{transformer_encoder.11}
  #allocation0 [shape = 'u32[]', space=smem, size = 0x4, offset = 0x4, fixed_abs, tag = 'smem constant byte address 0x4 - core index']
  #allocation1 [shape = 'u32[72,128]{1,0:T(1,128)}', space=vmem, size = 0x9000, scoped, tag = 'internal scratch']
  %s0 = inlined_call_operand.vmem [shape: f32[32,64], index: 0, kind: input, shape index: {}]
  %s1 = inlined_call_operand.vmem [shape: f32[64,128], index: 1, kind: input, shape index: {}]
  %s2 = inlined_call_operand.vmem [shape: f32[1,128], index: 2, kind: input, shape index: {}]
  %s3 = inlined_call_operand.vmem [shape: f32[128,64], index: 3, kind: input, shape index: {}]
  %s4 = inlined_call_operand.vmem [shape: f32[1,64], index: 4, kind: input, shape index: {}]
  %s5 = inlined_call_operand.vmem [shape: f32[1,64], index: 5, kind: input, shape index: {}]
  %s6 = inlined_call_operand.vmem [shape: f32[1,64], index: 6, kind: input, shape index: {}]
  %s7 = inlined_call_operand.vmem [shape: f32[32,64], index: 7, kind: output, shape index: {}]
  %s8 = sld [smem:[#allocation0]]
  $region38: #{transformer_encoder.11} parent=0
    _
  %s10 = ssub.s32 1, %s8
  %s11 = scalar_select 0, %s10, %s8
  // Predicated region
  $region2: #{transformer_encoder.11} parent=0 // pred_check
    _
  $region3: #{transformer_encoder.11} parent=0 // pred_check_branch
    %13 = sbr.rel (0) target = $region5
  $region4: #{transformer_encoder.11} parent=0 // pred_region
    _
  $region5: #{transformer_encoder.11} parent=0 // pred_fallthru
    _
  // Predicated region
  $region6: #{transformer_encoder.11} parent=0 // pred_check
    _
  $region7: #{transformer_encoder.11} parent=0 // pred_check_branch
    %15 = sbr.rel (0) target = $region9
  $region8: #{transformer_encoder.11} parent=0 // pred_region
    _
  $region9: #{transformer_encoder.11} parent=0 // pred_fallthru
    _
  // Predicated region
  $region10: #{transformer_encoder.11} parent=0 // pred_check
    _
  $region11: #{transformer_encoder.11} parent=0 // pred_check_branch
    %17 = sbr.rel (0) target = $region13
  $region12: #{transformer_encoder.11} parent=0 // pred_region
    _
  $region13: #{transformer_encoder.11} parent=0 // pred_fallthru
    _
  // Predicated region
  $region14: #{transformer_encoder.11} parent=0 // pred_check
    _
  $region15: #{transformer_encoder.11} parent=0 // pred_check_branch
    %19 = sbr.rel (0) target = $region17
  $region16: #{transformer_encoder.11} parent=0 // pred_region
    _
  $region17: #{transformer_encoder.11} parent=0 // pred_fallthru
    _
  // Predicated region
  $region18: #{transformer_encoder.11} parent=0 // pred_check
    _
  $region19: #{transformer_encoder.11} parent=0 // pred_check_branch
    %21 = sbr.rel (0) target = $region21
  $region20: #{transformer_encoder.11} parent=0 // pred_region
    _
  $region21: #{transformer_encoder.11} parent=0 // pred_fallthru
    _
  // Predicated region
  $region22: #{transformer_encoder.11} parent=0 // pred_check
    _
  $region23: #{transformer_encoder.11} parent=0 // pred_check_branch
    %23 = sbr.rel (0) target = $region25
  $region24: #{transformer_encoder.11} parent=0 // pred_region
    _
  $region25: #{transformer_encoder.11} parent=0 // pred_fallthru
    _
  // Predicated region
  $region26: #{transformer_encoder.11} parent=0 // pred_check
    _
  $region27: #{transformer_encoder.11} parent=0 // pred_check_branch
    %25 = sbr.rel (0) target = $region29
  $region28: #{transformer_encoder.11} parent=0 // pred_region
    _
  $region29: #{transformer_encoder.11} parent=0 // pred_fallthru
    _
  %v26 = vld [vmem:[%s0] sm:$0xff]
  %v27 = vld [vmem:[%s0 + $0x8] sm:$0xff]
  %v28 = vld [vmem:[%s0 + $0x10] sm:$0xff]
  %v29 = vld [vmem:[%s0 + $0x18] sm:$0xff]
  %v30 = vld [vmem:[%s1] sm:$0xff]
  %v31 = vld [vmem:[%s1 + $0x8] sm:$0xff]
  %v32 = vld [vmem:[%s1 + $0x10] sm:$0xff]
  %v33 = vld [vmem:[%s1 + $0x18] sm:$0xff]
  %v34 = vld [vmem:[%s1 + $0x20] sm:$0xff]
  %v35 = vld [vmem:[%s1 + $0x28] sm:$0xff]
  %v36 = vld [vmem:[%s1 + $0x30] sm:$0xff]
  %v37 = vld [vmem:[%s1 + $0x38] sm:$0xff]
  %v38 = vld [vmem:[%s2] sm:$0x1]
  %v40 = vperm.slane %v38, 0
  %vm42 = vcmask 523264
  %v44 = vsel %vm42, %v26, 0
  %v47 = vsel %vm42, %v27, 0
  %v50 = vsel %vm42, %v28, 0
  %v53 = vsel %vm42, %v29, 0
  %55 = vmatpush.msra.mxu0 0.0
  %56 = vmatpush.msra.mxu0 0.0
  %57 = vmatpush.msra.mxu0 0.0
  %58 = vmatpush.msra.mxu0 0.0
  %59 = vmatpush.msra.mxu0 0.0
  %60 = vmatpush.msra.mxu0 0.0
  %61 = vmatpush.msra.mxu0 0.0
  %62 = vmatpush.msra.mxu0 0.0
  %63 = vmatpush.msra.mxu0 %v37
  %64 = vmatpush.msra.mxu0 %v36
  %65 = vmatpush.msra.mxu0 %v35
  %66 = vmatpush.msra.mxu0 %v34
  %67 = vmatpush.msra.mxu0 %v33
  %68 = vmatpush.msra.mxu0 %v32
  %69 = vmatpush.msra.mxu0 %v31
  %70 = vmatpush.msra.mxu0 %v30
  %71 = vmatmul.f32.gmra.mxu0 %v44
  %v72 = vpop.f32.mrf.mxu0
  %v73 = vadd.f32 %v40, %v72
  %74 = vmatmul.f32.gmra.mxu0 %v47
  %v75 = vpop.f32.mrf.mxu0
  %v76 = vadd.f32 %v40, %v75
  %77 = vmatmul.f32.gmra.mxu0 %v50
  %v78 = vpop.f32.mrf.mxu0
  %v79 = vadd.f32 %v40, %v78
  %80 = vmatmul.f32.gmra.mxu0 %v53
  %v81 = vpop.f32.mrf.mxu0
  %v82 = vadd.f32 %v40, %v81
  %83 = vdwg.mxu0
  %v84 = vmax.f32 %v73, 0.0
  %v85 = vmax.f32 %v76, 0.0
  %v86 = vmax.f32 %v79, 0.0
  %v87 = vmax.f32 %v82, 0.0
  %v88 = vld [vmem:[%s3] sm:$0xff]
  %v89 = vld [vmem:[%s3 + $0x8] sm:$0xff]
  %v90 = vld [vmem:[%s3 + $0x10] sm:$0xff]
  %v91 = vld [vmem:[%s3 + $0x18] sm:$0xff]
  %v92 = vld [vmem:[%s3 + $0x20] sm:$0xff]
  %v93 = vld [vmem:[%s3 + $0x28] sm:$0xff]
  %v94 = vld [vmem:[%s3 + $0x30] sm:$0xff]
  %v95 = vld [vmem:[%s3 + $0x38] sm:$0xff]
  %v96 = vld [vmem:[%s3 + $0x40] sm:$0xff]
  %v97 = vld [vmem:[%s3 + $0x48] sm:$0xff]
  %v98 = vld [vmem:[%s3 + $0x50] sm:$0xff]
  %v99 = vld [vmem:[%s3 + $0x58] sm:$0xff]
  %v100 = vld [vmem:[%s3 + $0x60] sm:$0xff]
  %v101 = vld [vmem:[%s3 + $0x68] sm:$0xff]
  %v102 = vld [vmem:[%s3 + $0x70] sm:$0xff]
  %v103 = vld [vmem:[%s3 + $0x78] sm:$0xff]
  %v104 = vld [vmem:[%s4] sm:$0x1]
  %v106 = vperm.slane %v104, 0
  %108 = vmatpush.msra.mxu0 %v103
  %109 = vmatpush.msra.mxu0 %v102
  %110 = vmatpush.msra.mxu0 %v101
  %111 = vmatpush.msra.mxu0 %v100
  %112 = vmatpush.msra.mxu0 %v99
  %113 = vmatpush.msra.mxu0 %v98
  %114 = vmatpush.msra.mxu0 %v97
  %115 = vmatpush.msra.mxu0 %v96
  %116 = vmatpush.msra.mxu0 %v95
  %117 = vmatpush.msra.mxu0 %v94
  %118 = vmatpush.msra.mxu0 %v93
  %119 = vmatpush.msra.mxu0 %v92
  %120 = vmatpush.msra.mxu0 %v91
  %121 = vmatpush.msra.mxu0 %v90
  %122 = vmatpush.msra.mxu0 %v89
  %123 = vmatpush.msra.mxu0 %v88
  %124 = vmatmul.f32.gmra.mxu0 %v84
  %v125 = vpop.f32.mrf.mxu0
  %v126 = vadd.f32 %v106, %v125
  %127 = vmatmul.f32.gmra.mxu0 %v85
  %v128 = vpop.f32.mrf.mxu0
  %v129 = vadd.f32 %v106, %v128
  %130 = vmatmul.f32.gmra.mxu0 %v86
  %v131 = vpop.f32.mrf.mxu0
  %v132 = vadd.f32 %v106, %v131
  %133 = vmatmul.f32.gmra.mxu0 %v87
  %v134 = vpop.f32.mrf.mxu0
  %v135 = vadd.f32 %v106, %v134
  %136 = vdwg.mxu0
  %v137 = vadd.f32 %v26, %v126
  %v138 = vadd.f32 %v27, %v129
  %v139 = vadd.f32 %v28, %v132
  %v140 = vadd.f32 %v29, %v135
  %v141 = vsel %vm42, %v137, 0.0
  %142 = vadd.xlane.f32.xlu0 %v141
  %v143 = vpop.xlane.xlu0 %142
  %v144 = vsel %vm42, %v138, 0.0
  %145 = vadd.xlane.f32.xlu0 %v144
  %v146 = vpop.xlane.xlu0 %145
  %v147 = vsel %vm42, %v139, 0.0
  %148 = vadd.xlane.f32.xlu0 %v147
  %v149 = vpop.xlane.xlu0 %148
  %v150 = vsel %vm42, %v140, 0.0
  %151 = vadd.xlane.f32.xlu0 %v150
  %v152 = vpop.xlane.xlu0 %151
  %v153 = vrcp.pop 64.0
  %v154 = vmul.f32 64.0, %v153
  %v155 = vsub.f32 1.0, %v154
  %v156 = vmul.f32 %v153, %v155
  %v157 = vadd.f32 %v153, %v156
  %vm158 = vweird.f32 %v153
  %v159 = vsel %vm158, %v153, %v157
  %v160 = vmul.f32 %v143, %v159
  %v161 = vmul.f32 %v146, %v159
  %v162 = vmul.f32 %v149, %v159
  %v163 = vmul.f32 %v152, %v159
  %v164 = vsub.f32 %v137, %v160
  %v165 = vsub.f32 %v138, %v161
  %v166 = vsub.f32 %v139, %v162
  %v167 = vsub.f32 %v140, %v163
  %v168 = vmul.f32 %v164, %v164
  %v169 = vmul.f32 %v165, %v165
  %v170 = vmul.f32 %v166, %v166
  %v171 = vmul.f32 %v167, %v167
  %v172 = vsel %vm42, %v168, 0.0
  %173 = vadd.xlane.f32.xlu0 %v172
  %v174 = vpop.xlane.xlu0 %173
  %v175 = vsel %vm42, %v169, 0.0
  %176 = vadd.xlane.f32.xlu0 %v175
  %v177 = vpop.xlane.xlu0 %176
  %v178 = vsel %vm42, %v170, 0.0
  %179 = vadd.xlane.f32.xlu0 %v178
  %v180 = vpop.xlane.xlu0 %179
  %v181 = vsel %vm42, %v171, 0.0
  %182 = vadd.xlane.f32.xlu0 %v181
  %v183 = vpop.xlane.xlu0 %182
  %v184 = vmul.f32 %v174, %v159
  %v185 = vmul.f32 %v177, %v159
  %v186 = vmul.f32 %v180, %v159
  %v187 = vmul.f32 %v183, %v159
  %v188 = vadd.f32 %v184, 1e-06
  %v189 = vadd.f32 %v185, 1e-06
  %v190 = vadd.f32 %v186, 1e-06
  %v191 = vadd.f32 %v187, 1e-06
  %v192 = vrsqrt.pop %v188
  %v193 = vmul.f32 %v192, %v188
  %v194 = vmul.f32 %v193, %v192
  %v195 = vmul.f32 0.5, %v194
  %v196 = vsub.f32 1.5, %v195
  %v197 = vmul.f32 %v192, %v196
  %vm198 = vweird.f32 %v188
  %vm199 = vweird.f32 %v192
  %vm200 = vmor %vm198, %vm199
  %v201 = vsel %vm200, %v192, %v197
  %v202 = vrsqrt.pop %v189
  %v203 = vmul.f32 %v202, %v189
  %v204 = vmul.f32 %v203, %v202
  %v205 = vmul.f32 0.5, %v204
  %v206 = vsub.f32 1.5, %v205
  %v207 = vmul.f32 %v202, %v206
  %vm208 = vweird.f32 %v189
  %vm209 = vweird.f32 %v202
  %vm210 = vmor %vm208, %vm209
  %v211 = vsel %vm210, %v202, %v207
  %v212 = vrsqrt.pop %v190
  %v213 = vmul.f32 %v212, %v190
  %v214 = vmul.f32 %v213, %v212
  %v215 = vmul.f32 0.5, %v214
  %v216 = vsub.f32 1.5, %v215
  %v217 = vmul.f32 %v212, %v216
  %vm218 = vweird.f32 %v190
  %vm219 = vweird.f32 %v212
  %vm220 = vmor %vm218, %vm219
  %v221 = vsel %vm220, %v212, %v217
  %v222 = vrsqrt.pop %v191
  %v223 = vmul.f32 %v222, %v191
  %v224 = vmul.f32 %v223, %v222
  %v225 = vmul.f32 0.5, %v224
  %v226 = vsub.f32 1.5, %v225
  %v227 = vmul.f32 %v222, %v226
  %vm228 = vweird.f32 %v191
  %vm229 = vweird.f32 %v222
  %vm230 = vmor %vm228, %vm229
  %v231 = vsel %vm230, %v222, %v227
  %v232 = vmul.f32 %v164, %v201
  %v233 = vmul.f32 %v165, %v211
  %v234 = vmul.f32 %v166, %v221
  %v235 = vmul.f32 %v167, %v231
  %v236 = vld [vmem:[%s5] sm:$0x1]
  %v238 = vperm.slane %v236, 0
  %v240 = vmul.f32 %v232, %v238
  %v241 = vmul.f32 %v233, %v238
  %v242 = vmul.f32 %v234, %v238
  %v243 = vmul.f32 %v235, %v238
  %v244 = vld [vmem:[%s6] sm:$0x1]
  %v246 = vperm.slane %v244, 0
  %v248 = vadd.f32 %v240, %v246
  %v249 = vadd.f32 %v241, %v246
  %v250 = vadd.f32 %v242, %v246
  %v251 = vadd.f32 %v243, %v246
  %252 = vst.msk [vmem:[%s7] sm:$0xff] %vm42, %v248
  %253 = vst.msk [vmem:[%s7 + $0x8] sm:$0xff] %vm42, %v249
  %254 = vst.msk [vmem:[%s7 + $0x10] sm:$0xff] %vm42, %v250
  %255 = vst.msk [vmem:[%s7 + $0x18] sm:$0xff] %vm42, %v251
  // Predicated region
  $region30: #{transformer_encoder.11} parent=0 // pred_check
    _
  $region31: #{transformer_encoder.11} parent=0 // pred_check_branch
    %257 = sbr.rel (0) target = $region33
  $region32: #{transformer_encoder.11} parent=0 // pred_region
    _
  $region33: #{transformer_encoder.11} parent=0 // pred_fallthru
    _
  // Predicated region
  $region34: #{transformer_encoder.11} parent=0 // pred_check
    _
  $region35: #{transformer_encoder.11} parent=0 // pred_check_branch
    %259 = sbr.rel (0) target = $region37
  $region36: #{transformer_encoder.11} parent=0 // pred_region
    _
  $region37: #{transformer_encoder.11} parent=0 // pred_fallthru
    _

// kernel: transformer_encoder.15
$region0: #{transformer_encoder.15}
  #allocation0 [shape = 'u32[]', space=smem, size = 0x4, offset = 0x4, fixed_abs, tag = 'smem constant byte address 0x4 - core index']
  #allocation1 [shape = 'u32[72,128]{1,0:T(1,128)}', space=vmem, size = 0x9000, scoped, tag = 'internal scratch']
  %s0 = inlined_call_operand.vmem [shape: f32[32,64], index: 0, kind: input, shape index: {}]
  %s1 = inlined_call_operand.vmem [shape: f32[64,128], index: 1, kind: input, shape index: {}]
  %s2 = inlined_call_operand.vmem [shape: f32[1,128], index: 2, kind: input, shape index: {}]
  %s3 = inlined_call_operand.vmem [shape: f32[128,64], index: 3, kind: input, shape index: {}]
  %s4 = inlined_call_operand.vmem [shape: f32[1,64], index: 4, kind: input, shape index: {}]
  %s5 = inlined_call_operand.vmem [shape: f32[1,64], index: 5, kind: input, shape index: {}]
  %s6 = inlined_call_operand.vmem [shape: f32[1,64], index: 6, kind: input, shape index: {}]
  %s7 = inlined_call_operand.hbm [shape: f32[32,64], index: 7, kind: output, shape index: {}]
  %s8 = sld [smem:[#allocation0]]
  $region38: #{transformer_encoder.15} parent=0
    _
  %s10 = ssub.s32 1, %s8
  %s11 = scalar_select 0, %s10, %s8
  $region1: #{transformer_encoder.15} parent=0
    #allocation2 [shape = 'u8[16384]{0}', space=vmem, size = 0x4000, scoped, tag = 'output window, operand 0, single buffered']
    #allocation3 [shape = 's32[1]{0}', space=sflag, size = 0x4, scoped, tag = 'scoped memory for transformer_encoder.15']
    %12 = vsyncpa [#allocation3], 0
    // Predicated region
    $region2: #{transformer_encoder.15} parent=1 // pred_check
      _
    $region3: #{transformer_encoder.15} parent=1 // pred_check_branch
      %14 = sbr.rel (0) target = $region5
    $region4: #{transformer_encoder.15} parent=1 // pred_region
      _
    $region5: #{transformer_encoder.15} parent=1 // pred_fallthru
      _
    // Predicated region
    $region6: #{transformer_encoder.15} parent=1 // pred_check
      _
    $region7: #{transformer_encoder.15} parent=1 // pred_check_branch
      %16 = sbr.rel (0) target = $region9
    $region8: #{transformer_encoder.15} parent=1 // pred_region
      _
    $region9: #{transformer_encoder.15} parent=1 // pred_fallthru
      _
    // Predicated region
    $region10: #{transformer_encoder.15} parent=1 // pred_check
      _
    $region11: #{transformer_encoder.15} parent=1 // pred_check_branch
      %18 = sbr.rel (0) target = $region13
    $region12: #{transformer_encoder.15} parent=1 // pred_region
      _
    $region13: #{transformer_encoder.15} parent=1 // pred_fallthru
      _
    // Predicated region
    $region14: #{transformer_encoder.15} parent=1 // pred_check
      _
    $region15: #{transformer_encoder.15} parent=1 // pred_check_branch
      %20 = sbr.rel (0) target = $region17
    $region16: #{transformer_encoder.15} parent=1 // pred_region
      _
    $region17: #{transformer_encoder.15} parent=1 // pred_fallthru
      _
    // Predicated region
    $region18: #{transformer_encoder.15} parent=1 // pred_check
      _
    $region19: #{transformer_encoder.15} parent=1 // pred_check_branch
      %22 = sbr.rel (0) target = $region21
    $region20: #{transformer_encoder.15} parent=1 // pred_region
      _
    $region21: #{transformer_encoder.15} parent=1 // pred_fallthru
      _
    // Predicated region
    $region22: #{transformer_encoder.15} parent=1 // pred_check
      _
    $region23: #{transformer_encoder.15} parent=1 // pred_check_branch
      %24 = sbr.rel (0) target = $region25
    $region24: #{transformer_encoder.15} parent=1 // pred_region
      _
    $region25: #{transformer_encoder.15} parent=1 // pred_fallthru
      _
    // Predicated region
    $region26: #{transformer_encoder.15} parent=1 // pred_check
      _
    $region27: #{transformer_encoder.15} parent=1 // pred_check_branch
      %26 = sbr.rel (0) target = $region29
    $region28: #{transformer_encoder.15} parent=1 // pred_region
      _
    $region29: #{transformer_encoder.15} parent=1 // pred_fallthru
      _
    %v27 = vld [vmem:[%s0] sm:$0xff]
    %v28 = vld [vmem:[%s0 + $0x8] sm:$0xff]
    %v29 = vld [vmem:[%s0 + $0x10] sm:$0xff]
    %v30 = vld [vmem:[%s0 + $0x18] sm:$0xff]
    %v31 = vld [vmem:[%s1] sm:$0xff]
    %v32 = vld [vmem:[%s1 + $0x8] sm:$0xff]
    %v33 = vld [vmem:[%s1 + $0x10] sm:$0xff]
    %v34 = vld [vmem:[%s1 + $0x18] sm:$0xff]
    %v35 = vld [vmem:[%s1 + $0x20] sm:$0xff]
    %v36 = vld [vmem:[%s1 + $0x28] sm:$0xff]
    %v37 = vld [vmem:[%s1 + $0x30] sm:$0xff]
    %v38 = vld [vmem:[%s1 + $0x38] sm:$0xff]
    %v39 = vld [vmem:[%s2] sm:$0x1]
    %v41 = vperm.slane %v39, 0
    %vm43 = vcmask 523264
    %v45 = vsel %vm43, %v27, 0
    %v48 = vsel %vm43, %v28, 0
    %v51 = vsel %vm43, %v29, 0
    %v54 = vsel %vm43, %v30, 0
    %56 = vmatpush.msra.mxu0 0.0
    %57 = vmatpush.msra.mxu0 0.0
    %58 = vmatpush.msra.mxu0 0.0
    %59 = vmatpush.msra.mxu0 0.0
    %60 = vmatpush.msra.mxu0 0.0
    %61 = vmatpush.msra.mxu0 0.0
    %62 = vmatpush.msra.mxu0 0.0
    %63 = vmatpush.msra.mxu0 0.0
    %64 = vmatpush.msra.mxu0 %v38
    %65 = vmatpush.msra.mxu0 %v37
    %66 = vmatpush.msra.mxu0 %v36
    %67 = vmatpush.msra.mxu0 %v35
    %68 = vmatpush.msra.mxu0 %v34
    %69 = vmatpush.msra.mxu0 %v33
    %70 = vmatpush.msra.mxu0 %v32
    %71 = vmatpush.msra.mxu0 %v31
    %72 = vmatmul.f32.gmra.mxu0 %v45
    %v73 = vpop.f32.mrf.mxu0
    %v74 = vadd.f32 %v41, %v73
    %75 = vmatmul.f32.gmra.mxu0 %v48
    %v76 = vpop.f32.mrf.mxu0
    %v77 = vadd.f32 %v41, %v76
    %78 = vmatmul.f32.gmra.mxu0 %v51
    %v79 = vpop.f32.mrf.mxu0
    %v80 = vadd.f32 %v41, %v79
    %81 = vmatmul.f32.gmra.mxu0 %v54
    %v82 = vpop.f32.mrf.mxu0
    %v83 = vadd.f32 %v41, %v82
    %84 = vdwg.mxu0
    %v85 = vmax.f32 %v74, 0.0
    %v86 = vmax.f32 %v77, 0.0
    %v87 = vmax.f32 %v80, 0.0
    %v88 = vmax.f32 %v83, 0.0
    %v89 = vld [vmem:[%s3] sm:$0xff]
    %v90 = vld [vmem:[%s3 + $0x8] sm:$0xff]
    %v91 = vld [vmem:[%s3 + $0x10] sm:$0xff]
    %v92 = vld [vmem:[%s3 + $0x18] sm:$0xff]
    %v93 = vld [vmem:[%s3 + $0x20] sm:$0xff]
    %v94 = vld [vmem:[%s3 + $0x28] sm:$0xff]
    %v95 = vld [vmem:[%s3 + $0x30] sm:$0xff]
    %v96 = vld [vmem:[%s3 + $0x38] sm:$0xff]
    %v97 = vld [vmem:[%s3 + $0x40] sm:$0xff]
    %v98 = vld [vmem:[%s3 + $0x48] sm:$0xff]
    %v99 = vld [vmem:[%s3 + $0x50] sm:$0xff]
    %v100 = vld [vmem:[%s3 + $0x58] sm:$0xff]
    %v101 = vld [vmem:[%s3 + $0x60] sm:$0xff]
    %v102 = vld [vmem:[%s3 + $0x68] sm:$0xff]
    %v103 = vld [vmem:[%s3 + $0x70] sm:$0xff]
    %v104 = vld [vmem:[%s3 + $0x78] sm:$0xff]
    %v105 = vld [vmem:[%s4] sm:$0x1]
    %v107 = vperm.slane %v105, 0
    %109 = vmatpush.msra.mxu0 %v104
    %110 = vmatpush.msra.mxu0 %v103
    %111 = vmatpush.msra.mxu0 %v102
    %112 = vmatpush.msra.mxu0 %v101
    %113 = vmatpush.msra.mxu0 %v100
    %114 = vmatpush.msra.mxu0 %v99
    %115 = vmatpush.msra.mxu0 %v98
    %116 = vmatpush.msra.mxu0 %v97
    %117 = vmatpush.msra.mxu0 %v96
    %118 = vmatpush.msra.mxu0 %v95
    %119 = vmatpush.msra.mxu0 %v94
    %120 = vmatpush.msra.mxu0 %v93
    %121 = vmatpush.msra.mxu0 %v92
    %122 = vmatpush.msra.mxu0 %v91
    %123 = vmatpush.msra.mxu0 %v90
    %124 = vmatpush.msra.mxu0 %v89
    %125 = vmatmul.f32.gmra.mxu0 %v85
    %v126 = vpop.f32.mrf.mxu0
    %v127 = vadd.f32 %v107, %v126
    %128 = vmatmul.f32.gmra.mxu0 %v86
    %v129 = vpop.f32.mrf.mxu0
    %v130 = vadd.f32 %v107, %v129
    %131 = vmatmul.f32.gmra.mxu0 %v87
    %v132 = vpop.f32.mrf.mxu0
    %v133 = vadd.f32 %v107, %v132
    %134 = vmatmul.f32.gmra.mxu0 %v88
    %v135 = vpop.f32.mrf.mxu0
    %v136 = vadd.f32 %v107, %v135
    %137 = vdwg.mxu0
    %v138 = vadd.f32 %v27, %v127
    %v139 = vadd.f32 %v28, %v130
    %v140 = vadd.f32 %v29, %v133
    %v141 = vadd.f32 %v30, %v136
    %v142 = vsel %vm43, %v138, 0.0
    %143 = vadd.xlane.f32.xlu0 %v142
    %v144 = vpop.xlane.xlu0 %143
    %v145 = vsel %vm43, %v139, 0.0
    %146 = vadd.xlane.f32.xlu0 %v145
    %v147 = vpop.xlane.xlu0 %146
    %v148 = vsel %vm43, %v140, 0.0
    %149 = vadd.xlane.f32.xlu0 %v148
    %v150 = vpop.xlane.xlu0 %149
    %v151 = vsel %vm43, %v141, 0.0
    %152 = vadd.xlane.f32.xlu0 %v151
    %v153 = vpop.xlane.xlu0 %152
    %v154 = vrcp.pop 64.0
    %v155 = vmul.f32 64.0, %v154
    %v156 = vsub.f32 1.0, %v155
    %v157 = vmul.f32 %v154, %v156
    %v158 = vadd.f32 %v154, %v157
    %vm159 = vweird.f32 %v154
    %v160 = vsel %vm159, %v154, %v158
    %v161 = vmul.f32 %v144, %v160
    %v162 = vmul.f32 %v147, %v160
    %v163 = vmul.f32 %v150, %v160
    %v164 = vmul.f32 %v153, %v160
    %v165 = vsub.f32 %v138, %v161
    %v166 = vsub.f32 %v139, %v162
    %v167 = vsub.f32 %v140, %v163
    %v168 = vsub.f32 %v141, %v164
    %v169 = vmul.f32 %v165, %v165
    %v170 = vmul.f32 %v166, %v166
    %v171 = vmul.f32 %v167, %v167
    %v172 = vmul.f32 %v168, %v168
    %v173 = vsel %vm43, %v169, 0.0
    %174 = vadd.xlane.f32.xlu0 %v173
    %v175 = vpop.xlane.xlu0 %174
    %v176 = vsel %vm43, %v170, 0.0
    %177 = vadd.xlane.f32.xlu0 %v176
    %v178 = vpop.xlane.xlu0 %177
    %v179 = vsel %vm43, %v171, 0.0
    %180 = vadd.xlane.f32.xlu0 %v179
    %v181 = vpop.xlane.xlu0 %180
    %v182 = vsel %vm43, %v172, 0.0
    %183 = vadd.xlane.f32.xlu0 %v182
    %v184 = vpop.xlane.xlu0 %183
    %v185 = vmul.f32 %v175, %v160
    %v186 = vmul.f32 %v178, %v160
    %v187 = vmul.f32 %v181, %v160
    %v188 = vmul.f32 %v184, %v160
    %v189 = vadd.f32 %v185, 1e-06
    %v190 = vadd.f32 %v186, 1e-06
    %v191 = vadd.f32 %v187, 1e-06
    %v192 = vadd.f32 %v188, 1e-06
    %v193 = vrsqrt.pop %v189
    %v194 = vmul.f32 %v193, %v189
    %v195 = vmul.f32 %v194, %v193
    %v196 = vmul.f32 0.5, %v195
    %v197 = vsub.f32 1.5, %v196
    %v198 = vmul.f32 %v193, %v197
    %vm199 = vweird.f32 %v189
    %vm200 = vweird.f32 %v193
    %vm201 = vmor %vm199, %vm200
    %v202 = vsel %vm201, %v193, %v198
    %v203 = vrsqrt.pop %v190
    %v204 = vmul.f32 %v203, %v190
    %v205 = vmul.f32 %v204, %v203
    %v206 = vmul.f32 0.5, %v205
    %v207 = vsub.f32 1.5, %v206
    %v208 = vmul.f32 %v203, %v207
    %vm209 = vweird.f32 %v190
    %vm210 = vweird.f32 %v203
    %vm211 = vmor %vm209, %vm210
    %v212 = vsel %vm211, %v203, %v208
    %v213 = vrsqrt.pop %v191
    %v214 = vmul.f32 %v213, %v191
    %v215 = vmul.f32 %v214, %v213
    %v216 = vmul.f32 0.5, %v215
    %v217 = vsub.f32 1.5, %v216
    %v218 = vmul.f32 %v213, %v217
    %vm219 = vweird.f32 %v191
    %vm220 = vweird.f32 %v213
    %vm221 = vmor %vm219, %vm220
    %v222 = vsel %vm221, %v213, %v218
    %v223 = vrsqrt.pop %v192
    %v224 = vmul.f32 %v223, %v192
    %v225 = vmul.f32 %v224, %v223
    %v226 = vmul.f32 0.5, %v225
    %v227 = vsub.f32 1.5, %v226
    %v228 = vmul.f32 %v223, %v227
    %vm229 = vweird.f32 %v192
    %vm230 = vweird.f32 %v223
    %vm231 = vmor %vm229, %vm230
    %v232 = vsel %vm231, %v223, %v228
    %v233 = vmul.f32 %v165, %v202
    %v234 = vmul.f32 %v166, %v212
    %v235 = vmul.f32 %v167, %v222
    %v236 = vmul.f32 %v168, %v232
    %v237 = vld [vmem:[%s5] sm:$0x1]
    %v239 = vperm.slane %v237, 0
    %v241 = vmul.f32 %v233, %v239
    %v242 = vmul.f32 %v234, %v239
    %v243 = vmul.f32 %v235, %v239
    %v244 = vmul.f32 %v236, %v239
    %v245 = vld [vmem:[%s6] sm:$0x1]
    %v247 = vperm.slane %v245, 0
    %v249 = vadd.f32 %v241, %v247
    %v250 = vadd.f32 %v242, %v247
    %v251 = vadd.f32 %v243, %v247
    %v252 = vadd.f32 %v244, %v247
    %253 = vst.msk [vmem:[#allocation2] sm:$0xff] %vm43, %v249
    %254 = vst.msk [vmem:[#allocation2 + $0x8] sm:$0xff] %vm43, %v250
    %255 = vst.msk [vmem:[#allocation2 + $0x10] sm:$0xff] %vm43, %v251
    %256 = vst.msk [vmem:[#allocation2 + $0x18] sm:$0xff] %vm43, %v252
    // Predicated region
    $region30: #{transformer_encoder.15} parent=1 // pred_check
      _
    $region31: #{transformer_encoder.15} parent=1 // pred_check_branch
      %258 = sbr.rel (0) target = $region33
    $region32: #{transformer_encoder.15} parent=1 // pred_region
      %260 = vsyncadd [#allocation3], 0
      %s261 = sshll.u32 [#allocation2], 4
      %s262 = int_to_ptr.vmem [resolvable:$true] %s261
      %s263 = sshll.u32 %s7, 4
      %s264 = int_to_ptr.hbm [resolvable:$true] %s263
      %269 = dma.vmem_to_hbm [thread:$0]  %s262, 512, %s264, [#allocation3], 128, 128, 8
    $region33: #{transformer_encoder.15} parent=1 // pred_fallthru
      _
    // Predicated region
    $region34: #{transformer_encoder.15} parent=1 // pred_check
      _
    $region35: #{transformer_encoder.15} parent=1 // pred_check_branch
      %271 = sbr.rel (0) target = $region37
    $region36: #{transformer_encoder.15} parent=1 // pred_region
      %273 = dma.done [#allocation3], 512
    $region37: #{transformer_encoder.15} parent=1 // pred_fallthru
      _
    %274 = vsyncpa [#allocation3], 1

</llo_original>
